<compile_context>
chip_gen: v7x
topology: tpu7x:2x2x1
jax: 0.10.0
libtpu: 0.0.40
codegen_flags: <defaults>
</compile_context>

<pallas_src>
import functools

import jax
import jax.numpy as jnp
from jax.experimental import pallas as pl
from jax.experimental.pallas import tpu as pltpu


def _round_up(x, m):
    return (x + m - 1) // m * m


def _cdiv(a, b):
    return (a + b - 1) // b


def _conv_bn_kernel(x_ref, xh_ref, w_ref, shift_ref, o_ref, *, shifts, cin, oc, tm):
    """One lane-dense output tile of conv + folded BatchNorm.

    x_ref:     (C, TM)        streamed tile of the flattened padded input
    xh_ref:    (C, HALO)      the HALO lanes right after this tile (cross-tile taps)
    w_ref:     (KH*KW, OC, C) conv weight with BN scale folded in (resident)
    shift_ref: (OC, 1)        BN shift (resident)
    o_ref:     (OC, TM)       output tile, M on the lane axis
    """
    if max(shifts) == 0:                     # 1x1 conv: no halo needed
        xv = x_ref[...]
    else:
        xv = jnp.concatenate([x_ref[...], xh_ref[...]], axis=1)

    s0 = shifts[0]
    acc = jnp.dot(w_ref[0], jax.lax.slice(xv, (0, s0), (cin, s0 + tm)),
                  preferred_element_type=jnp.float32)
    for t in range(1, len(shifts)):          # static unrolled tap loop
        s = shifts[t]
        acc = acc + jnp.dot(w_ref[t], jax.lax.slice(xv, (0, s), (cin, s + tm)),
                            preferred_element_type=jnp.float32)
    o_ref[...] = (acc + shift_ref[...]).astype(o_ref.dtype)


def _pick_tile(m, cin, oc, target=1024, budget_bytes=12 * 1024 * 1024):
    """Largest 128-multiple tile <= target whose per-step VMEM stays in budget."""
    tm = min(_round_up(m, 128), _round_up(target, 128))
    while tm > 128:
        per_step = 4 * tm * (2 * cin      # double-buffered input tiles
                             + 2 * cin    # halo + in-kernel concat/slice temporaries
                             + 2 * oc     # double-buffered output tiles
                             + oc)        # f32 accumulator
        if per_step <= budget_bytes:
            break
        tm -= 128
    return max(tm, 128)


def basic_conv2d_cm(x_cm, weight, gamma, beta, running_mean, running_var,
                    *, padding, eps=1e-5, tm_target=1024):
    """Conv2d(bias=False, stride=1, dilation=1) + eval-mode BatchNorm2d.

    x_cm:   (C, N, H, W)    channel-major input
    weight: (OC, C, KH, KW) PyTorch Conv2d layout
    returns (OC, N, OH, OW) channel-major output
    """
    C, N, H, W = x_cm.shape
    OC, C2, KH, KW = weight.shape
    assert C2 == C
    Hp, Wp = H + 2 * padding, W + 2 * padding
    OH, OW = Hp - KH + 1, Wp - KW + 1

    # zero-pad spatially and flatten to (C, M), M = N*Hp*Wp (flat spatial on lanes)
    xp = jnp.pad(x_cm, ((0, 0), (0, 0), (padding, padding), (padding, padding)))
    M = N * Hp * Wp
    xf = xp.reshape(C, M)

    # flat lane shift of each conv tap (stride=1, dilation=1)
    shifts = tuple(kh * Wp + kw for kh in range(KH) for kw in range(KW))
    halo = max(128, _round_up(max(shifts), 128))

    tm = _pick_tile(M, C, OC, target=tm_target)
    tm = _round_up(max(tm, halo), halo)          # halo-block index math needs halo | tm
    n_tiles = _cdiv(M, tm)
    mp_out = n_tiles * tm
    mp_in = mp_out + halo                        # keeps every halo block in bounds
    xf = jnp.pad(xf, ((0, 0), (0, mp_in - M))).astype(jnp.float32)

    # fold the BN scale into the conv weight; keep only the shift for the epilogue
    scale = gamma / jnp.sqrt(running_var + eps)                              # (OC,)
    shift = (beta - running_mean * scale).reshape(OC, 1).astype(jnp.float32)
    w_taps = jnp.transpose(weight, (2, 3, 0, 1)).reshape(KH * KW, OC, C)
    w_taps = (w_taps * scale[None, :, None]).astype(jnp.float32)

    kernel = functools.partial(_conv_bn_kernel, shifts=shifts, cin=C, oc=OC, tm=tm)
    blocks_per_halo = tm // halo

    out = pl.pallas_call(
        kernel,
        out_shape=jax.ShapeDtypeStruct((OC, mp_out), jnp.float32),
        grid_spec=pltpu.PrefetchScalarGridSpec(
            num_scalar_prefetch=0,
            grid=(n_tiles,),
            in_specs=[
                pl.BlockSpec((C, tm), lambda i: (0, i)),                            # streamed
                pl.BlockSpec((C, halo), lambda i: (0, (i + 1) * blocks_per_halo)),  # halo
                pl.BlockSpec((KH * KW, OC, C), lambda i: (0, 0, 0)),                # resident
                pl.BlockSpec((OC, 1), lambda i: (0, 0)),                            # resident
            ],
            out_specs=pl.BlockSpec((OC, tm), lambda i: (0, i)),
        ),
        compiler_params=pltpu.CompilerParams(
            dimension_semantics=("parallel",),        # megacore-shardable on v7x
            vmem_limit_bytes=48 * 1024 * 1024),
    )(xf, xf, w_taps, shift)

    # drop flat padding and the invalid right/bottom border of the padded grid
    out = out[:, :M].reshape(OC, N, Hp, Wp)[:, :, :OH, :OW]
    return out


@jax.jit
def reduction_forward(x, params):
    """Reduction.forward: BasicConv2d(1x1) -> BasicConv2d(3x3, p=1) -> BasicConv2d(3x3, p=1)."""
    paddings = (0, 1, 1)
    xc = jnp.transpose(x, (1, 0, 2, 3))                  # NCHW -> channel-major
    for (w, g, b, m, v), p in zip(params, paddings):
        xc = basic_conv2d_cm(xc, w, g, b, m, v, padding=p)
    return jnp.transpose(xc, (1, 0, 2, 3))               # back to NCHW


def _reference_reduction(x, params, eps=1e-5):
    y = x
    for (w, g, b, m, v), p in zip(params, (0, 1, 1)):
        y = jax.lax.conv_general_dilated(
            y, w, window_strides=(1, 1), padding=((p, p), (p, p)),
            dimension_numbers=("NCHW", "OIHW", "NCHW"),
            precision=jax.lax.Precision.HIGHEST)
        scale = g / jnp.sqrt(v + eps)
        shift = b - m * scale
        y = y * scale[None, :, None, None] + shift[None, :, None, None]
    return y


if __name__ == "__main__":
    # Reduction(in_channel=4, out_channel=8) on (2, 4, 16, 16)
    N, C_IN, H, W = 2, 4, 16, 16
    C_OUT = 8

    key = jax.random.PRNGKey(0)
    kx, k1, k2, k3 = jax.random.split(key, 4)

    def make_layer(k, cin, cout, ksize):
        kw_, kg, kb, km, kv = jax.random.split(k, 5)
        fan_in = cin * ksize * ksize
        w = jax.random.normal(kw_, (cout, cin, ksize, ksize), jnp.float32) / jnp.sqrt(fan_in * 1.0)
        g = 1.0 + 0.1 * jax.random.normal(kg, (cout,), jnp.float32)
        b = 0.1 * jax.random.normal(kb, (cout,), jnp.float32)
        m = 0.1 * jax.random.normal(km, (cout,), jnp.float32)
        v = 1.0 + 0.1 * jax.random.uniform(kv, (cout,), jnp.float32)
        return (w, g, b, m, v)

    x = jax.random.normal(kx, (N, C_IN, H, W), jnp.float32)
    params = (make_layer(k1, C_IN, C_OUT, 1),
              make_layer(k2, C_OUT, C_OUT, 3),
              make_layer(k3, C_OUT, C_OUT, 3))

    out = reduction_forward(x, params)
    out = jax.block_until_ready(out)

    ref = _reference_reduction(x, params)
    assert out.shape == (N, C_OUT, H, W), out.shape
    err = float(jnp.max(jnp.abs(out - ref)))
    assert jnp.allclose(out, ref, atol=5e-3, rtol=5e-3), \
        f"mismatch vs reference (max abs err {err})"

    print("KERNEL_OK")
</pallas_src>

<mosaic_0001>
module attributes {stable_mosaic.version = 11 : i64} {
  func.func @_conv_bn_kernel(%arg0: i32, %arg1: memref<4x512xf32, #tpu.memory_space<vmem>>, %arg2: memref<4x128xf32, #tpu.memory_space<vmem>>, %arg3: memref<1x8x4xf32, #tpu.memory_space<vmem>>, %arg4: memref<8x1xf32, #tpu.memory_space<vmem>>, %arg5: memref<8x512xf32, #tpu.memory_space<vmem>>) attributes {dimension_semantics = [#tpu.dimension_semantics<parallel>], iteration_bounds = array<i64: 1>, scalar_prefetch = 0 : i64, scratch_operands = 0 : i64, tpu.core_type = #tpu.core_type<tc>, window_params = [{transform_indices = @transform_0, window_bounds = array<i64: 4, 512>}, {transform_indices = @transform_1, window_bounds = array<i64: 4, 128>}, {pipeline_mode = #tpu.pipeline_mode<synchronous>, transform_indices = @transform_2, window_bounds = array<i64: 1, 8, 4>}, {pipeline_mode = #tpu.pipeline_mode<synchronous>, transform_indices = @transform_3, window_bounds = array<i64: 8, 1>}, {transform_indices = @transform_4, window_bounds = array<i64: 8, 512>}]} {
    %c0 = arith.constant 0 : index
    %c0_0 = arith.constant 0 : index
    %0 = vector.load %arg1[%c0, %c0_0] : memref<4x512xf32, #tpu.memory_space<vmem>>, vector<4x512xf32>
    %c0_1 = arith.constant 0 : index
    %c0_2 = arith.constant 0 : index
    %c0_3 = arith.constant 0 : index
    %1 = vector.load %arg3[%c0_1, %c0_2, %c0_3] : memref<1x8x4xf32, #tpu.memory_space<vmem>>, vector<1x8x4xf32>
    %2 = vector.shape_cast %1 : vector<1x8x4xf32> to vector<8x4xf32>
    %3 = vector.extract_strided_slice %0 {offsets = [0, 0], sizes = [4, 512], strides = [1, 1]} : vector<4x512xf32> to vector<4x512xf32>
    %cst = arith.constant dense<0.000000e+00> : vector<8x512xf32>
    %4 = tpu.matmul %2, %3, %cst {dimension_numbers = #tpu.dot_dimension_numbers<[1], [0], [0], [1], [0, 0, 1, 1], [], []>} : vector<8x4xf32>, vector<4x512xf32>, vector<8x512xf32> -> vector<8x512xf32>
    %c0_4 = arith.constant 0 : index
    %c0_5 = arith.constant 0 : index
    %5 = vector.load %arg4[%c0_4, %c0_5] : memref<8x1xf32, #tpu.memory_space<vmem>>, vector<8x1xf32>
    %6 = vector.broadcast %5 : vector<8x1xf32> to vector<8x512xf32>
    %7 = arith.addf %4, %6 : vector<8x512xf32>
    %c0_6 = arith.constant 0 : index
    %c0_7 = arith.constant 0 : index
    %8 = vector.load %arg5[%c0_6, %c0_7] : memref<8x512xf32, #tpu.memory_space<vmem>>, vector<8x512xf32>
    tpu.vector_store %arg5[%c0_6, %c0_7], %7 {strides = array<i32>} : memref<8x512xf32, #tpu.memory_space<vmem>>, vector<8x512xf32>,
    return
  }
  func.func @transform_0(%arg0: i32) -> (i32, i32) {
    %c0_i32 = arith.constant 0 : i32
    %c0_i32_0 = arith.constant 0 : i32
    return %c0_i32, %arg0 : i32, i32
  }
  func.func @transform_1(%arg0: i32) -> (i32, i32) {
    %c1_i32 = arith.constant 1 : i32
    %0 = arith.addi %arg0, %c1_i32 : i32
    %c4_i32 = arith.constant 4 : i32
    %1 = arith.muli %0, %c4_i32 : i32
    %c0_i32 = arith.constant 0 : i32
    %c0_i32_0 = arith.constant 0 : i32
    return %c0_i32, %1 : i32, i32
  }
  func.func @transform_2(%arg0: i32) -> (i32, i32, i32) {
    %c0_i32 = arith.constant 0 : i32
    %c0_i32_0 = arith.constant 0 : i32
    %c0_i32_1 = arith.constant 0 : i32
    %c0_i32_2 = arith.constant 0 : i32
    return %c0_i32, %c0_i32_0, %c0_i32_1 : i32, i32, i32
  }
  func.func @transform_3(%arg0: i32) -> (i32, i32) {
    %c0_i32 = arith.constant 0 : i32
    %c0_i32_0 = arith.constant 0 : i32
    %c0_i32_1 = arith.constant 0 : i32
    return %c0_i32, %c0_i32_0 : i32, i32
  }
  func.func @transform_4(%arg0: i32) -> (i32, i32) {
    %c0_i32 = arith.constant 0 : i32
    %c0_i32_0 = arith.constant 0 : i32
    return %c0_i32, %arg0 : i32, i32
  }
}

module attributes {stable_mosaic.version = 11 : i64} {
  func.func @_conv_bn_kernel(%arg0: i32, %arg1: memref<8x768xf32, #tpu.memory_space<vmem>>, %arg2: memref<8x128xf32, #tpu.memory_space<vmem>>, %arg3: memref<9x8x8xf32, #tpu.memory_space<vmem>>, %arg4: memref<8x1xf32, #tpu.memory_space<vmem>>, %arg5: memref<8x768xf32, #tpu.memory_space<vmem>>) attributes {dimension_semantics = [#tpu.dimension_semantics<parallel>], iteration_bounds = array<i64: 1>, scalar_prefetch = 0 : i64, scratch_operands = 0 : i64, tpu.core_type = #tpu.core_type<tc>, window_params = [{transform_indices = @transform_0, window_bounds = array<i64: 8, 768>}, {transform_indices = @transform_1, window_bounds = array<i64: 8, 128>}, {pipeline_mode = #tpu.pipeline_mode<synchronous>, transform_indices = @transform_2, window_bounds = array<i64: 9, 8, 8>}, {pipeline_mode = #tpu.pipeline_mode<synchronous>, transform_indices = @transform_3, window_bounds = array<i64: 8, 1>}, {transform_indices = @transform_4, window_bounds = array<i64: 8, 768>}]} {
    %c0 = arith.constant 0 : index
    %c0_0 = arith.constant 0 : index
    %0 = vector.load %arg1[%c0, %c0_0] : memref<8x768xf32, #tpu.memory_space<vmem>>, vector<8x768xf32>
    %c0_1 = arith.constant 0 : index
    %c0_2 = arith.constant 0 : index
    %1 = vector.load %arg2[%c0_1, %c0_2] : memref<8x128xf32, #tpu.memory_space<vmem>>, vector<8x128xf32>
    %2 = tpu.concatenate %0, %1 in 1 : vector<8x768xf32>, vector<8x128xf32> -> vector<8x896xf32>
    %c0_3 = arith.constant 0 : index
    %c0_4 = arith.constant 0 : index
    %c0_5 = arith.constant 0 : index
    %3 = vector.load %arg3[%c0_3, %c0_4, %c0_5] : memref<9x8x8xf32, #tpu.memory_space<vmem>>, vector<1x8x8xf32>
    %4 = vector.shape_cast %3 : vector<1x8x8xf32> to vector<8x8xf32>
    %5 = vector.extract_strided_slice %2 {offsets = [0, 0], sizes = [8, 768], strides = [1, 1]} : vector<8x896xf32> to vector<8x768xf32>
    %cst = arith.constant dense<0.000000e+00> : vector<8x768xf32>
    %6 = tpu.matmul %4, %5, %cst {dimension_numbers = #tpu.dot_dimension_numbers<[1], [0], [0], [1], [0, 0, 1, 1], [], []>} : vector<8x8xf32>, vector<8x768xf32>, vector<8x768xf32> -> vector<8x768xf32>
    %c1 = arith.constant 1 : index
    %c0_6 = arith.constant 0 : index
    %c0_7 = arith.constant 0 : index
    %7 = vector.load %arg3[%c1, %c0_6, %c0_7] : memref<9x8x8xf32, #tpu.memory_space<vmem>>, vector<1x8x8xf32>
    %8 = vector.shape_cast %7 : vector<1x8x8xf32> to vector<8x8xf32>
    %9 = vector.extract_strided_slice %2 {offsets = [0, 1], sizes = [8, 768], strides = [1, 1]} : vector<8x896xf32> to vector<8x768xf32>
    %cst_8 = arith.constant dense<0.000000e+00> : vector<8x768xf32>
    %10 = tpu.matmul %8, %9, %cst_8 {dimension_numbers = #tpu.dot_dimension_numbers<[1], [0], [0], [1], [0, 0, 1, 1], [], []>} : vector<8x8xf32>, vector<8x768xf32>, vector<8x768xf32> -> vector<8x768xf32>
    %11 = arith.addf %6, %10 : vector<8x768xf32>
    %c2 = arith.constant 2 : index
    %c0_9 = arith.constant 0 : index
    %c0_10 = arith.constant 0 : index
    %12 = vector.load %arg3[%c2, %c0_9, %c0_10] : memref<9x8x8xf32, #tpu.memory_space<vmem>>, vector<1x8x8xf32>
    %13 = vector.shape_cast %12 : vector<1x8x8xf32> to vector<8x8xf32>
    %14 = vector.extract_strided_slice %2 {offsets = [0, 2], sizes = [8, 768], strides = [1, 1]} : vector<8x896xf32> to vector<8x768xf32>
    %cst_11 = arith.constant dense<0.000000e+00> : vector<8x768xf32>
    %15 = tpu.matmul %13, %14, %cst_11 {dimension_numbers = #tpu.dot_dimension_numbers<[1], [0], [0], [1], [0, 0, 1, 1], [], []>} : vector<8x8xf32>, vector<8x768xf32>, vector<8x768xf32> -> vector<8x768xf32>
    %16 = arith.addf %11, %15 : vector<8x768xf32>
    %c3 = arith.constant 3 : index
    %c0_12 = arith.constant 0 : index
    %c0_13 = arith.constant 0 : index
    %17 = vector.load %arg3[%c3, %c0_12, %c0_13] : memref<9x8x8xf32, #tpu.memory_space<vmem>>, vector<1x8x8xf32>
    %18 = vector.shape_cast %17 : vector<1x8x8xf32> to vector<8x8xf32>
    %19 = vector.extract_strided_slice %2 {offsets = [0, 18], sizes = [8, 768], strides = [1, 1]} : vector<8x896xf32> to vector<8x768xf32>
    %cst_14 = arith.constant dense<0.000000e+00> : vector<8x768xf32>
    %20 = tpu.matmul %18, %19, %cst_14 {dimension_numbers = #tpu.dot_dimension_numbers<[1], [0], [0], [1], [0, 0, 1, 1], [], []>} : vector<8x8xf32>, vector<8x768xf32>, vector<8x768xf32> -> vector<8x768xf32>
    %21 = arith.addf %16, %20 : vector<8x768xf32>
    %c4 = arith.constant 4 : index
    %c0_15 = arith.constant 0 : index
    %c0_16 = arith.constant 0 : index
    %22 = vector.load %arg3[%c4, %c0_15, %c0_16] : memref<9x8x8xf32, #tpu.memory_space<vmem>>, vector<1x8x8xf32>
    %23 = vector.shape_cast %22 : vector<1x8x8xf32> to vector<8x8xf32>
    %24 = vector.extract_strided_slice %2 {offsets = [0, 19], sizes = [8, 768], strides = [1, 1]} : vector<8x896xf32> to vector<8x768xf32>
    %cst_17 = arith.constant dense<0.000000e+00> : vector<8x768xf32>
    %25 = tpu.matmul %23, %24, %cst_17 {dimension_numbers = #tpu.dot_dimension_numbers<[1], [0], [0], [1], [0, 0, 1, 1], [], []>} : vector<8x8xf32>, vector<8x768xf32>, vector<8x768xf32> -> vector<8x768xf32>
    %26 = arith.addf %21, %25 : vector<8x768xf32>
    %c5 = arith.constant 5 : index
    %c0_18 = arith.constant 0 : index
    %c0_19 = arith.constant 0 : index
    %27 = vector.load %arg3[%c5, %c0_18, %c0_19] : memref<9x8x8xf32, #tpu.memory_space<vmem>>, vector<1x8x8xf32>
    %28 = vector.shape_cast %27 : vector<1x8x8xf32> to vector<8x8xf32>
    %29 = vector.extract_strided_slice %2 {offsets = [0, 20], sizes = [8, 768], strides = [1, 1]} : vector<8x896xf32> to vector<8x768xf32>
    %cst_20 = arith.constant dense<0.000000e+00> : vector<8x768xf32>
    %30 = tpu.matmul %28, %29, %cst_20 {dimension_numbers = #tpu.dot_dimension_numbers<[1], [0], [0], [1], [0, 0, 1, 1], [], []>} : vector<8x8xf32>, vector<8x768xf32>, vector<8x768xf32> -> vector<8x768xf32>
    %31 = arith.addf %26, %30 : vector<8x768xf32>
    %c6 = arith.constant 6 : index
    %c0_21 = arith.constant 0 : index
    %c0_22 = arith.constant 0 : index
    %32 = vector.load %arg3[%c6, %c0_21, %c0_22] : memref<9x8x8xf32, #tpu.memory_space<vmem>>, vector<1x8x8xf32>
    %33 = vector.shape_cast %32 : vector<1x8x8xf32> to vector<8x8xf32>
    %34 = vector.extract_strided_slice %2 {offsets = [0, 36], sizes = [8, 768], strides = [1, 1]} : vector<8x896xf32> to vector<8x768xf32>
    %cst_23 = arith.constant dense<0.000000e+00> : vector<8x768xf32>
    %35 = tpu.matmul %33, %34, %cst_23 {dimension_numbers = #tpu.dot_dimension_numbers<[1], [0], [0], [1], [0, 0, 1, 1], [], []>} : vector<8x8xf32>, vector<8x768xf32>, vector<8x768xf32> -> vector<8x768xf32>
    %36 = arith.addf %31, %35 : vector<8x768xf32>
    %c7 = arith.constant 7 : index
    %c0_24 = arith.constant 0 : index
    %c0_25 = arith.constant 0 : index
    %37 = vector.load %arg3[%c7, %c0_24, %c0_25] : memref<9x8x8xf32, #tpu.memory_space<vmem>>, vector<1x8x8xf32>
    %38 = vector.shape_cast %37 : vector<1x8x8xf32> to vector<8x8xf32>
    %39 = vector.extract_strided_slice %2 {offsets = [0, 37], sizes = [8, 768], strides = [1, 1]} : vector<8x896xf32> to vector<8x768xf32>
    %cst_26 = arith.constant dense<0.000000e+00> : vector<8x768xf32>
    %40 = tpu.matmul %38, %39, %cst_26 {dimension_numbers = #tpu.dot_dimension_numbers<[1], [0], [0], [1], [0, 0, 1, 1], [], []>} : vector<8x8xf32>, vector<8x768xf32>, vector<8x768xf32> -> vector<8x768xf32>
    %41 = arith.addf %36, %40 : vector<8x768xf32>
    %c8 = arith.constant 8 : index
    %c0_27 = arith.constant 0 : index
    %c0_28 = arith.constant 0 : index
    %42 = vector.load %arg3[%c8, %c0_27, %c0_28] : memref<9x8x8xf32, #tpu.memory_space<vmem>>, vector<1x8x8xf32>
    %43 = vector.shape_cast %42 : vector<1x8x8xf32> to vector<8x8xf32>
    %44 = vector.extract_strided_slice %2 {offsets = [0, 38], sizes = [8, 768], strides = [1, 1]} : vector<8x896xf32> to vector<8x768xf32>
    %cst_29 = arith.constant dense<0.000000e+00> : vector<8x768xf32>
    %45 = tpu.matmul %43, %44, %cst_29 {dimension_numbers = #tpu.dot_dimension_numbers<[1], [0], [0], [1], [0, 0, 1, 1], [], []>} : vector<8x8xf32>, vector<8x768xf32>, vector<8x768xf32> -> vector<8x768xf32>
    %46 = arith.addf %41, %45 : vector<8x768xf32>
    %c0_30 = arith.constant 0 : index
    %c0_31 = arith.constant 0 : index
    %47 = vector.load %arg4[%c0_30, %c0_31] : memref<8x1xf32, #tpu.memory_space<vmem>>, vector<8x1xf32>
    %48 = vector.broadcast %47 : vector<8x1xf32> to vector<8x768xf32>
    %49 = arith.addf %46, %48 : vector<8x768xf32>
    %c0_32 = arith.constant 0 : index
    %c0_33 = arith.constant 0 : index
    %50 = vector.load %arg5[%c0_32, %c0_33] : memref<8x768xf32, #tpu.memory_space<vmem>>, vector<8x768xf32>
    tpu.vector_store %arg5[%c0_32, %c0_33], %49 {strides = array<i32>} : memref<8x768xf32, #tpu.memory_space<vmem>>, vector<8x768xf32>,
    return
  }
  func.func @transform_0(%arg0: i32) -> (i32, i32) {
    %c0_i32 = arith.constant 0 : i32
    %c0_i32_0 = arith.constant 0 : i32
    return %c0_i32, %arg0 : i32, i32
  }
  func.func @transform_1(%arg0: i32) -> (i32, i32) {
    %c1_i32 = arith.constant 1 : i32
    %0 = arith.addi %arg0, %c1_i32 : i32
    %c6_i32 = arith.constant 6 : i32
    %1 = arith.muli %0, %c6_i32 : i32
    %c0_i32 = arith.constant 0 : i32
    %c0_i32_0 = arith.constant 0 : i32
    return %c0_i32, %1 : i32, i32
  }
  func.func @transform_2(%arg0: i32) -> (i32, i32, i32) {
    %c0_i32 = arith.constant 0 : i32
    %c0_i32_0 = arith.constant 0 : i32
    %c0_i32_1 = arith.constant 0 : i32
    %c0_i32_2 = arith.constant 0 : i32
    return %c0_i32, %c0_i32_0, %c0_i32_1 : i32, i32, i32
  }
  func.func @transform_3(%arg0: i32) -> (i32, i32) {
    %c0_i32 = arith.constant 0 : i32
    %c0_i32_0 = arith.constant 0 : i32
    %c0_i32_1 = arith.constant 0 : i32
    return %c0_i32, %c0_i32_0 : i32, i32
  }
  func.func @transform_4(%arg0: i32) -> (i32, i32) {
    %c0_i32 = arith.constant 0 : i32
    %c0_i32_0 = arith.constant 0 : i32
    return %c0_i32, %arg0 : i32, i32
  }
}

</mosaic_0001>

<llo_original>
// kernel: reduction_forward.3
$region0: #{reduction_forward.3}
  #allocation0 [shape = 'u32[]', space=smem, size = 0x4, offset = 0x4, fixed_abs, tag = 'smem constant byte address 0x4 - core index']
  #allocation1 [shape = 'u32[144,128]{1,0:T(1,128)}', space=vmem, size = 0x12000, scoped, tag = 'internal scratch']
  %s0 = inlined_call_operand.vmem [shape: f32[4,640], index: 0, kind: input, shape index: {}, may-alias: {0,1}]
  %s1 = inlined_call_operand.vmem [shape: f32[4,640], index: 1, kind: input, shape index: {}, may-alias: {0,1}]
  %s2 = inlined_call_operand.vmem [shape: f32[1,8,4], index: 2, kind: input, shape index: {}]
  %s3 = inlined_call_operand.vmem [shape: f32[8,1], index: 3, kind: input, shape index: {}]
  %s4 = inlined_call_operand.vmem [shape: f32[8,512], index: 4, kind: output, shape index: {}]
  %s5 = sld [smem:[#allocation0]]
  $region26: #{reduction_forward.3} parent=0
    _
  %s7 = ssub.s32 1, %s5
  %s8 = scalar_select 0, %s7, %s5
  // Predicated region
  $region2: #{reduction_forward.3} parent=0 // pred_check
    _
  $region3: #{reduction_forward.3} parent=0 // pred_check_branch
    %10 = sbr.rel (0) target = $region5
  $region4: #{reduction_forward.3} parent=0 // pred_region
    _
  $region5: #{reduction_forward.3} parent=0 // pred_fallthru
    _
  // Predicated region
  $region6: #{reduction_forward.3} parent=0 // pred_check
    _
  $region7: #{reduction_forward.3} parent=0 // pred_check_branch
    %12 = sbr.rel (0) target = $region9
  $region8: #{reduction_forward.3} parent=0 // pred_region
    %s13 = sadd.s32 0, 1
    %s14 = smul.u32 %s13, 4
    %p15 = scmp.lt.s32.totalorder %s14, 4
    %s16 = scalar_select %p15, %s14, 4
    %s17 = smul.addr %s16, 4
    %s18 = scalar_lea.vmem %s1, %s17
    %s19 = sadd.s32 0, 1
    %s20 = smul.u32 %s19, 4
  $region9: #{reduction_forward.3} parent=0 // pred_fallthru
    _
  // Predicated region
  $region10: #{reduction_forward.3} parent=0 // pred_check
    _
  $region11: #{reduction_forward.3} parent=0 // pred_check_branch
    %22 = sbr.rel (0) target = $region13
  $region12: #{reduction_forward.3} parent=0 // pred_region
    _
  $region13: #{reduction_forward.3} parent=0 // pred_fallthru
    _
  // Predicated region
  $region14: #{reduction_forward.3} parent=0 // pred_check
    _
  $region15: #{reduction_forward.3} parent=0 // pred_check_branch
    %24 = sbr.rel (0) target = $region17
  $region16: #{reduction_forward.3} parent=0 // pred_region
    _
  $region17: #{reduction_forward.3} parent=0 // pred_fallthru
    _
  %s25 = sadd.s32 0, 1
  %s26 = smul.u32 %s25, 4
  %p27 = scmp.lt.s32.totalorder %s26, 4
  %s28 = scalar_select %p27, %s26, 4
  %s29 = smul.addr %s28, 4
  %s30 = scalar_lea.vmem %s1, %s29
  %s31 = sadd.s32 0, 1
  %s32 = smul.u32 %s31, 4
  %p33 = scmp.lt.s32.totalorder %s32, 4
  %s34 = scalar_select %p33, %s32, 4
  %s35 = smul.addr %s34, 4
  %s36 = scalar_lea.vmem %s1, %s35
  %s37 = sadd.s32 0, 1
  %s38 = smul.u32 %s37, 4
  %v39 = vld [vmem:[%s0] sm:$0xff]
  %v40 = vld [vmem:[%s0 + $0x8] sm:$0xff]
  %v41 = vld [vmem:[%s2] sm:$0xff]
  %v42 = vld [vmem:[%s3] sm:$0xff]
  %44 = vset.pattern.permute.xlu0 0
  %45 = vperm.xlu0 %44, %v42
  %v46 = vpop.permute.xlu0 %45
  %v50 = vcombine.high %v39, %v39
  %v51 = vcombine.high %v40, %v40
  %vm52 = vcmask 31744
  %v54 = vsel %vm52, %v41, 0
  %vm56 = vcmask 1043456
  %v57 = vsel %vm56, %v39, 0
  %v59 = vsel %vm56, %v50, 0
  %v61 = vsel %vm56, %v40, 0
  %v63 = vsel %vm56, %v51, 0
  %65 = vmatprep.subr.mxu0 %v59
  %66 = vmatpush1.msra.mxu0 %v57
  %67 = vmatprep.subr.mxu0 0.0
  %68 = vmatpush1.msra.mxu0 0.0
  %69 = vmatprep.subr.mxu0 0.0
  %70 = vmatpush1.msra.mxu0 0.0
  %71 = vmatprep.subr.mxu0 0.0
  %72 = vmatpush1.msra.mxu0 0.0
  %73 = vmatprep.subr.mxu0 0.0
  %74 = vmatpush1.msra.mxu0 0.0
  %75 = vmatprep.subr.mxu0 0.0
  %76 = vmatpush1.msra.mxu0 0.0
  %77 = vmatprep.subr.mxu0 0.0
  %78 = vmatpush1.msra.mxu0 0.0
  %79 = vmatprep.subr.mxu0 0.0
  %80 = vmatpush1.msra.mxu0 0.0
  %81 = vmatprep.subr.mxu0 0.0
  %82 = vmatpush1.msra.mxu0 0.0
  %83 = vmatprep.subr.mxu0 0.0
  %84 = vmatpush1.msra.mxu0 0.0
  %85 = vmatprep.subr.mxu0 0.0
  %86 = vmatpush1.msra.mxu0 0.0
  %87 = vmatprep.subr.mxu0 0.0
  %88 = vmatpush1.msra.mxu0 0.0
  %89 = vmatprep.subr.mxu0 0.0
  %90 = vmatpush1.msra.mxu0 0.0
  %91 = vmatprep.subr.mxu0 0.0
  %92 = vmatpush1.msra.mxu0 0.0
  %93 = vmatprep.subr.mxu0 0.0
  %94 = vmatpush1.msra.mxu0 0.0
  %95 = vmatprep.subr.mxu0 0.0
  %96 = vmatpush1.msra.mxu0 0.0
  %97 = vmatprep.subr.mxu0 0.0
  %98 = vmatpush1.msra.mxu0 0.0
  %99 = vmatprep.subr.mxu0 0.0
  %100 = vmatpush1.msra.mxu0 0.0
  %101 = vmatprep.subr.mxu0 0.0
  %102 = vmatpush1.msra.mxu0 0.0
  %103 = vmatprep.subr.mxu0 0.0
  %104 = vmatpush1.msra.mxu0 0.0
  %105 = vmatprep.subr.mxu0 0.0
  %106 = vmatpush1.msra.mxu0 0.0
  %107 = vmatprep.subr.mxu0 0.0
  %108 = vmatpush1.msra.mxu0 0.0
  %109 = vmatprep.subr.mxu0 0.0
  %110 = vmatpush1.msra.mxu0 0.0
  %111 = vmatprep.subr.mxu0 0.0
  %112 = vmatpush1.msra.mxu0 0.0
  %113 = vmatprep.subr.mxu0 0.0
  %114 = vmatpush1.msra.mxu0 0.0
  %115 = vmatprep.subr.mxu0 0.0
  %116 = vmatpush1.msra.mxu0 0.0
  %117 = vmatprep.subr.mxu0 0.0
  %118 = vmatpush1.msra.mxu0 0.0
  %119 = vmatprep.subr.mxu0 0.0
  %120 = vmatpush1.msra.mxu0 0.0
  %121 = vmatprep.subr.mxu0 0.0
  %122 = vmatpush1.msra.mxu0 0.0
  %123 = vmatprep.subr.mxu0 0.0
  %124 = vmatpush1.msra.mxu0 0.0
  %125 = vmatprep.subr.mxu0 0.0
  %126 = vmatpush1.msra.mxu0 0.0
  %127 = vmatprep.subr.mxu0 0.0
  %128 = vmatpush1.msra.mxu0 0.0
  %129 = vmatprep.mubr.f32.mxu0 0.0
  %130 = vmatmul.mubr.f32.gmra.mrb[0].mxu0 %v54
  %v131 = vpop.f32.mrb[0].mxu0
  %v132 = vadd.f32 %v46, %v131
  %v133 = vpop.f32.mrb[0].mxu0
  %v134 = vadd.f32 %v46, %v133
  %135 = vdwg.mxu0
  %136 = vmatprep.subr.mxu0 %v63
  %137 = vmatpush1.msra.mxu0 %v61
  %138 = vmatprep.subr.mxu0 0.0
  %139 = vmatpush1.msra.mxu0 0.0
  %140 = vmatprep.subr.mxu0 0.0
  %141 = vmatpush1.msra.mxu0 0.0
  %142 = vmatprep.subr.mxu0 0.0
  %143 = vmatpush1.msra.mxu0 0.0
  %144 = vmatprep.subr.mxu0 0.0
  %145 = vmatpush1.msra.mxu0 0.0
  %146 = vmatprep.subr.mxu0 0.0
  %147 = vmatpush1.msra.mxu0 0.0
  %148 = vmatprep.subr.mxu0 0.0
  %149 = vmatpush1.msra.mxu0 0.0
  %150 = vmatprep.subr.mxu0 0.0
  %151 = vmatpush1.msra.mxu0 0.0
  %152 = vmatprep.subr.mxu0 0.0
  %153 = vmatpush1.msra.mxu0 0.0
  %154 = vmatprep.subr.mxu0 0.0
  %155 = vmatpush1.msra.mxu0 0.0
  %156 = vmatprep.subr.mxu0 0.0
  %157 = vmatpush1.msra.mxu0 0.0
  %158 = vmatprep.subr.mxu0 0.0
  %159 = vmatpush1.msra.mxu0 0.0
  %160 = vmatprep.subr.mxu0 0.0
  %161 = vmatpush1.msra.mxu0 0.0
  %162 = vmatprep.subr.mxu0 0.0
  %163 = vmatpush1.msra.mxu0 0.0
  %164 = vmatprep.subr.mxu0 0.0
  %165 = vmatpush1.msra.mxu0 0.0
  %166 = vmatprep.subr.mxu0 0.0
  %167 = vmatpush1.msra.mxu0 0.0
  %168 = vmatprep.subr.mxu0 0.0
  %169 = vmatpush1.msra.mxu0 0.0
  %170 = vmatprep.subr.mxu0 0.0
  %171 = vmatpush1.msra.mxu0 0.0
  %172 = vmatprep.subr.mxu0 0.0
  %173 = vmatpush1.msra.mxu0 0.0
  %174 = vmatprep.subr.mxu0 0.0
  %175 = vmatpush1.msra.mxu0 0.0
  %176 = vmatprep.subr.mxu0 0.0
  %177 = vmatpush1.msra.mxu0 0.0
  %178 = vmatprep.subr.mxu0 0.0
  %179 = vmatpush1.msra.mxu0 0.0
  %180 = vmatprep.subr.mxu0 0.0
  %181 = vmatpush1.msra.mxu0 0.0
  %182 = vmatprep.subr.mxu0 0.0
  %183 = vmatpush1.msra.mxu0 0.0
  %184 = vmatprep.subr.mxu0 0.0
  %185 = vmatpush1.msra.mxu0 0.0
  %186 = vmatprep.subr.mxu0 0.0
  %187 = vmatpush1.msra.mxu0 0.0
  %188 = vmatprep.subr.mxu0 0.0
  %189 = vmatpush1.msra.mxu0 0.0
  %190 = vmatprep.subr.mxu0 0.0
  %191 = vmatpush1.msra.mxu0 0.0
  %192 = vmatprep.subr.mxu0 0.0
  %193 = vmatpush1.msra.mxu0 0.0
  %194 = vmatprep.subr.mxu0 0.0
  %195 = vmatpush1.msra.mxu0 0.0
  %196 = vmatprep.subr.mxu0 0.0
  %197 = vmatpush1.msra.mxu0 0.0
  %198 = vmatprep.subr.mxu0 0.0
  %199 = vmatpush1.msra.mxu0 0.0
  %200 = vmatprep.mubr.f32.mxu0 0.0
  %201 = vmatmul.mubr.f32.gmra.mrb[0].mxu0 %v54
  %v202 = vpop.f32.mrb[0].mxu0
  %v203 = vadd.f32 %v46, %v202
  %v204 = vpop.f32.mrb[0].mxu0
  %v205 = vadd.f32 %v46, %v204
  %206 = vdwg.mxu0
  %207 = vst [vmem:[%s4] sm:$0xff] %v132
  %208 = vst [vmem:[%s4 + $0x8] sm:$0xff] %v134
  %209 = vst [vmem:[%s4 + $0x10] sm:$0xff] %v203
  %210 = vst [vmem:[%s4 + $0x18] sm:$0xff] %v205
  // Predicated region
  $region18: #{reduction_forward.3} parent=0 // pred_check
    _
  $region19: #{reduction_forward.3} parent=0 // pred_check_branch
    %212 = sbr.rel (0) target = $region21
  $region20: #{reduction_forward.3} parent=0 // pred_region
    _
  $region21: #{reduction_forward.3} parent=0 // pred_fallthru
    _
  // Predicated region
  $region22: #{reduction_forward.3} parent=0 // pred_check
    _
  $region23: #{reduction_forward.3} parent=0 // pred_check_branch
    %214 = sbr.rel (0) target = $region25
  $region24: #{reduction_forward.3} parent=0 // pred_region
    _
  $region25: #{reduction_forward.3} parent=0 // pred_fallthru
    _

// kernel: reduction_forward.4
$region0: #{reduction_forward.4}
  #allocation0 [shape = 'u32[]', space=smem, size = 0x4, offset = 0x4, fixed_abs, tag = 'smem constant byte address 0x4 - core index']
  #allocation1 [shape = 'u32[144,128]{1,0:T(1,128)}', space=vmem, size = 0x12000, scoped, tag = 'internal scratch']
  %s0 = inlined_call_operand.vmem [shape: f32[8,896], index: 0, kind: input, shape index: {}, may-alias: {0,1}]
  %s1 = inlined_call_operand.vmem [shape: f32[8,896], index: 1, kind: input, shape index: {}, may-alias: {0,1}]
  %s2 = inlined_call_operand.vmem [shape: f32[9,8,8], index: 2, kind: input, shape index: {}]
  %s3 = inlined_call_operand.vmem [shape: f32[8,1], index: 3, kind: input, shape index: {}]
  %s4 = inlined_call_operand.vmem [shape: f32[8,768], index: 4, kind: output, shape index: {}]
  %s5 = sld [smem:[#allocation0]]
  $region26: #{reduction_forward.4} parent=0
    _
  %s7 = ssub.s32 1, %s5
  %s8 = scalar_select 0, %s7, %s5
  // Predicated region
  $region2: #{reduction_forward.4} parent=0 // pred_check
    _
  $region3: #{reduction_forward.4} parent=0 // pred_check_branch
    %10 = sbr.rel (0) target = $region5
  $region4: #{reduction_forward.4} parent=0 // pred_region
    _
  $region5: #{reduction_forward.4} parent=0 // pred_fallthru
    _
  // Predicated region
  $region6: #{reduction_forward.4} parent=0 // pred_check
    _
  $region7: #{reduction_forward.4} parent=0 // pred_check_branch
    %12 = sbr.rel (0) target = $region9
  $region8: #{reduction_forward.4} parent=0 // pred_region
    %s13 = sadd.s32 0, 1
    %s14 = smul.u32 %s13, 6
    %p15 = scmp.lt.s32.totalorder %s14, 6
    %s16 = scalar_select %p15, %s14, 6
    %s17 = smul.addr %s16, 8
    %s18 = scalar_lea.vmem %s1, %s17
    %s19 = sadd.s32 0, 1
    %s20 = smul.u32 %s19, 6
  $region9: #{reduction_forward.4} parent=0 // pred_fallthru
    _
  // Predicated region
  $region10: #{reduction_forward.4} parent=0 // pred_check
    _
  $region11: #{reduction_forward.4} parent=0 // pred_check_branch
    %22 = sbr.rel (0) target = $region13
  $region12: #{reduction_forward.4} parent=0 // pred_region
    _
  $region13: #{reduction_forward.4} parent=0 // pred_fallthru
    _
  // Predicated region
  $region14: #{reduction_forward.4} parent=0 // pred_check
    _
  $region15: #{reduction_forward.4} parent=0 // pred_check_branch
    %24 = sbr.rel (0) target = $region17
  $region16: #{reduction_forward.4} parent=0 // pred_region
    _
  $region17: #{reduction_forward.4} parent=0 // pred_fallthru
    _
  %s25 = sadd.s32 0, 1
  %s26 = smul.u32 %s25, 6
  %p27 = scmp.lt.s32.totalorder %s26, 6
  %s28 = scalar_select %p27, %s26, 6
  %s29 = smul.addr %s28, 8
  %s30 = scalar_lea.vmem %s1, %s29
  %s31 = sadd.s32 0, 1
  %s32 = smul.u32 %s31, 6
  %p33 = scmp.lt.s32.totalorder %s32, 6
  %s34 = scalar_select %p33, %s32, 6
  %s35 = smul.addr %s34, 8
  %s36 = scalar_lea.vmem %s1, %s35
  %s37 = sadd.s32 0, 1
  %s38 = smul.u32 %s37, 6
  %v39 = vld [vmem:[%s0] sm:$0xff]
  %v40 = vld [vmem:[%s0 + $0x8] sm:$0xff]
  %v41 = vld [vmem:[%s0 + $0x10] sm:$0xff]
  %v42 = vld [vmem:[%s0 + $0x18] sm:$0xff]
  %v43 = vld [vmem:[%s0 + $0x20] sm:$0xff]
  %v44 = vld [vmem:[%s0 + $0x28] sm:$0xff]
  %v45 = vld [vmem:[%s36] sm:$0xff]
  %v46 = vld [vmem:[%s2] sm:$0xff]
  %s47 = scalar_lea.vmem %s2, 8
  %v48 = vld [vmem:[%s47] sm:$0xff]
  %56 = vrot.lane.b32.xlu0 %v39, 127
  %v57 = vpop.permute.xlu0 %56
  %58 = vrot.lane.b32.xlu0 %v40, 127
  %v59 = vpop.permute.xlu0 %58
  %60 = vrot.lane.b32.xlu0 %v41, 127
  %v61 = vpop.permute.xlu0 %60
  %62 = vrot.lane.b32.xlu0 %v42, 127
  %v63 = vpop.permute.xlu0 %62
  %64 = vrot.lane.b32.xlu0 %v43, 127
  %v65 = vpop.permute.xlu0 %64
  %66 = vrot.lane.b32.xlu0 %v44, 127
  %v67 = vpop.permute.xlu0 %66
  %68 = vrot.lane.b32.xlu0 %v45, 127
  %v69 = vpop.permute.xlu0 %68
  %vm70 = vcmask 1039360
  %v71 = vsel %vm70, %v57, %v59
  %v72 = vsel %vm70, %v59, %v61
  %v73 = vsel %vm70, %v61, %v63
  %v74 = vsel %vm70, %v63, %v65
  %v75 = vsel %vm70, %v65, %v67
  %v76 = vsel %vm70, %v67, %v69
  %vm83 = vcmask 64512
  %v85 = vsel %vm83, %v48, 0
  %87 = vmatprep.subr.mxu0 %v72
  %88 = vmatpush1.msra.mxu0 %v71
  %89 = vmatprep.subr.mxu0 0.0
  %90 = vmatpush1.msra.mxu0 0.0
  %91 = vmatprep.subr.mxu0 0.0
  %92 = vmatpush1.msra.mxu0 0.0
  %93 = vmatprep.subr.mxu0 0.0
  %94 = vmatpush1.msra.mxu0 0.0
  %95 = vmatprep.subr.mxu0 0.0
  %96 = vmatpush1.msra.mxu0 0.0
  %97 = vmatprep.subr.mxu0 0.0
  %98 = vmatpush1.msra.mxu0 0.0
  %99 = vmatprep.subr.mxu0 0.0
  %100 = vmatpush1.msra.mxu0 0.0
  %101 = vmatprep.subr.mxu0 0.0
  %102 = vmatpush1.msra.mxu0 0.0
  %103 = vmatprep.subr.mxu0 0.0
  %104 = vmatpush1.msra.mxu0 0.0
  %105 = vmatprep.subr.mxu0 0.0
  %106 = vmatpush1.msra.mxu0 0.0
  %107 = vmatprep.subr.mxu0 0.0
  %108 = vmatpush1.msra.mxu0 0.0
  %109 = vmatprep.subr.mxu0 0.0
  %110 = vmatpush1.msra.mxu0 0.0
  %111 = vmatprep.subr.mxu0 0.0
  %112 = vmatpush1.msra.mxu0 0.0
  %113 = vmatprep.subr.mxu0 0.0
  %114 = vmatpush1.msra.mxu0 0.0
  %115 = vmatprep.subr.mxu0 0.0
  %116 = vmatpush1.msra.mxu0 0.0
  %117 = vmatprep.subr.mxu0 0.0
  %118 = vmatpush1.msra.mxu0 0.0
  %119 = vmatprep.subr.mxu0 0.0
  %120 = vmatpush1.msra.mxu0 0.0
  %121 = vmatprep.subr.mxu0 0.0
  %122 = vmatpush1.msra.mxu0 0.0
  %123 = vmatprep.subr.mxu0 0.0
  %124 = vmatpush1.msra.mxu0 0.0
  %125 = vmatprep.subr.mxu0 0.0
  %126 = vmatpush1.msra.mxu0 0.0
  %127 = vmatprep.subr.mxu0 0.0
  %128 = vmatpush1.msra.mxu0 0.0
  %129 = vmatprep.subr.mxu0 0.0
  %130 = vmatpush1.msra.mxu0 0.0
  %131 = vmatprep.subr.mxu0 0.0
  %132 = vmatpush1.msra.mxu0 0.0
  %133 = vmatprep.subr.mxu0 0.0
  %134 = vmatpush1.msra.mxu0 0.0
  %135 = vmatprep.subr.mxu0 0.0
  %136 = vmatpush1.msra.mxu0 0.0
  %137 = vmatprep.subr.mxu0 0.0
  %138 = vmatpush1.msra.mxu0 0.0
  %139 = vmatprep.subr.mxu0 0.0
  %140 = vmatpush1.msra.mxu0 0.0
  %141 = vmatprep.subr.mxu0 0.0
  %142 = vmatpush1.msra.mxu0 0.0
  %143 = vmatprep.subr.mxu0 0.0
  %144 = vmatpush1.msra.mxu0 0.0
  %145 = vmatprep.subr.mxu0 0.0
  %146 = vmatpush1.msra.mxu0 0.0
  %147 = vmatprep.subr.mxu0 0.0
  %148 = vmatpush1.msra.mxu0 0.0
  %149 = vmatprep.subr.mxu0 0.0
  %150 = vmatpush1.msra.mxu0 0.0
  %151 = vmatprep.mubr.f32.mxu0 0.0
  %152 = vmatmul.mubr.f32.gmra.mrb[0].mxu0 %v85
  %v153 = vpop.f32.mrb[0].mxu0
  %v154 = vadd.f32 0.0, %v153
  %v155 = vpop.f32.mrb[0].mxu0
  %v156 = vadd.f32 0.0, %v155
  %157 = vdwg.mxu0
  %158 = vmatprep.subr.mxu0 %v74
  %159 = vmatpush1.msra.mxu0 %v73
  %160 = vmatprep.subr.mxu0 0.0
  %161 = vmatpush1.msra.mxu0 0.0
  %162 = vmatprep.subr.mxu0 0.0
  %163 = vmatpush1.msra.mxu0 0.0
  %164 = vmatprep.subr.mxu0 0.0
  %165 = vmatpush1.msra.mxu0 0.0
  %166 = vmatprep.subr.mxu0 0.0
  %167 = vmatpush1.msra.mxu0 0.0
  %168 = vmatprep.subr.mxu0 0.0
  %169 = vmatpush1.msra.mxu0 0.0
  %170 = vmatprep.subr.mxu0 0.0
  %171 = vmatpush1.msra.mxu0 0.0
  %172 = vmatprep.subr.mxu0 0.0
  %173 = vmatpush1.msra.mxu0 0.0
  %174 = vmatprep.subr.mxu0 0.0
  %175 = vmatpush1.msra.mxu0 0.0
  %176 = vmatprep.subr.mxu0 0.0
  %177 = vmatpush1.msra.mxu0 0.0
  %178 = vmatprep.subr.mxu0 0.0
  %179 = vmatpush1.msra.mxu0 0.0
  %180 = vmatprep.subr.mxu0 0.0
  %181 = vmatpush1.msra.mxu0 0.0
  %182 = vmatprep.subr.mxu0 0.0
  %183 = vmatpush1.msra.mxu0 0.0
  %184 = vmatprep.subr.mxu0 0.0
  %185 = vmatpush1.msra.mxu0 0.0
  %186 = vmatprep.subr.mxu0 0.0
  %187 = vmatpush1.msra.mxu0 0.0
  %188 = vmatprep.subr.mxu0 0.0
  %189 = vmatpush1.msra.mxu0 0.0
  %190 = vmatprep.subr.mxu0 0.0
  %191 = vmatpush1.msra.mxu0 0.0
  %192 = vmatprep.subr.mxu0 0.0
  %193 = vmatpush1.msra.mxu0 0.0
  %194 = vmatprep.subr.mxu0 0.0
  %195 = vmatpush1.msra.mxu0 0.0
  %196 = vmatprep.subr.mxu0 0.0
  %197 = vmatpush1.msra.mxu0 0.0
  %198 = vmatprep.subr.mxu0 0.0
  %199 = vmatpush1.msra.mxu0 0.0
  %200 = vmatprep.subr.mxu0 0.0
  %201 = vmatpush1.msra.mxu0 0.0
  %202 = vmatprep.subr.mxu0 0.0
  %203 = vmatpush1.msra.mxu0 0.0
  %204 = vmatprep.subr.mxu0 0.0
  %205 = vmatpush1.msra.mxu0 0.0
  %206 = vmatprep.subr.mxu0 0.0
  %207 = vmatpush1.msra.mxu0 0.0
  %208 = vmatprep.subr.mxu0 0.0
  %209 = vmatpush1.msra.mxu0 0.0
  %210 = vmatprep.subr.mxu0 0.0
  %211 = vmatpush1.msra.mxu0 0.0
  %212 = vmatprep.subr.mxu0 0.0
  %213 = vmatpush1.msra.mxu0 0.0
  %214 = vmatprep.subr.mxu0 0.0
  %215 = vmatpush1.msra.mxu0 0.0
  %216 = vmatprep.subr.mxu0 0.0
  %217 = vmatpush1.msra.mxu0 0.0
  %218 = vmatprep.subr.mxu0 0.0
  %219 = vmatpush1.msra.mxu0 0.0
  %220 = vmatprep.subr.mxu0 0.0
  %221 = vmatpush1.msra.mxu0 0.0
  %222 = vmatprep.mubr.f32.mxu0 0.0
  %223 = vmatmul.mubr.f32.gmra.mrb[0].mxu0 %v85
  %v224 = vpop.f32.mrb[0].mxu0
  %v225 = vadd.f32 0.0, %v224
  %v226 = vpop.f32.mrb[0].mxu0
  %v227 = vadd.f32 0.0, %v226
  %228 = vdwg.mxu0
  %229 = vmatprep.subr.mxu0 %v76
  %230 = vmatpush1.msra.mxu0 %v75
  %231 = vmatprep.subr.mxu0 0.0
  %232 = vmatpush1.msra.mxu0 0.0
  %233 = vmatprep.subr.mxu0 0.0
  %234 = vmatpush1.msra.mxu0 0.0
  %235 = vmatprep.subr.mxu0 0.0
  %236 = vmatpush1.msra.mxu0 0.0
  %237 = vmatprep.subr.mxu0 0.0
  %238 = vmatpush1.msra.mxu0 0.0
  %239 = vmatprep.subr.mxu0 0.0
  %240 = vmatpush1.msra.mxu0 0.0
  %241 = vmatprep.subr.mxu0 0.0
  %242 = vmatpush1.msra.mxu0 0.0
  %243 = vmatprep.subr.mxu0 0.0
  %244 = vmatpush1.msra.mxu0 0.0
  %245 = vmatprep.subr.mxu0 0.0
  %246 = vmatpush1.msra.mxu0 0.0
  %247 = vmatprep.subr.mxu0 0.0
  %248 = vmatpush1.msra.mxu0 0.0
  %249 = vmatprep.subr.mxu0 0.0
  %250 = vmatpush1.msra.mxu0 0.0
  %251 = vmatprep.subr.mxu0 0.0
  %252 = vmatpush1.msra.mxu0 0.0
  %253 = vmatprep.subr.mxu0 0.0
  %254 = vmatpush1.msra.mxu0 0.0
  %255 = vmatprep.subr.mxu0 0.0
  %256 = vmatpush1.msra.mxu0 0.0
  %257 = vmatprep.subr.mxu0 0.0
  %258 = vmatpush1.msra.mxu0 0.0
  %259 = vmatprep.subr.mxu0 0.0
  %260 = vmatpush1.msra.mxu0 0.0
  %261 = vmatprep.subr.mxu0 0.0
  %262 = vmatpush1.msra.mxu0 0.0
  %263 = vmatprep.subr.mxu0 0.0
  %264 = vmatpush1.msra.mxu0 0.0
  %265 = vmatprep.subr.mxu0 0.0
  %266 = vmatpush1.msra.mxu0 0.0
  %267 = vmatprep.subr.mxu0 0.0
  %268 = vmatpush1.msra.mxu0 0.0
  %269 = vmatprep.subr.mxu0 0.0
  %270 = vmatpush1.msra.mxu0 0.0
  %271 = vmatprep.subr.mxu0 0.0
  %272 = vmatpush1.msra.mxu0 0.0
  %273 = vmatprep.subr.mxu0 0.0
  %274 = vmatpush1.msra.mxu0 0.0
  %275 = vmatprep.subr.mxu0 0.0
  %276 = vmatpush1.msra.mxu0 0.0
  %277 = vmatprep.subr.mxu0 0.0
  %278 = vmatpush1.msra.mxu0 0.0
  %279 = vmatprep.subr.mxu0 0.0
  %280 = vmatpush1.msra.mxu0 0.0
  %281 = vmatprep.subr.mxu0 0.0
  %282 = vmatpush1.msra.mxu0 0.0
  %283 = vmatprep.subr.mxu0 0.0
  %284 = vmatpush1.msra.mxu0 0.0
  %285 = vmatprep.subr.mxu0 0.0
  %286 = vmatpush1.msra.mxu0 0.0
  %287 = vmatprep.subr.mxu0 0.0
  %288 = vmatpush1.msra.mxu0 0.0
  %289 = vmatprep.subr.mxu0 0.0
  %290 = vmatpush1.msra.mxu0 0.0
  %291 = vmatprep.subr.mxu0 0.0
  %292 = vmatpush1.msra.mxu0 0.0
  %293 = vmatprep.mubr.f32.mxu0 0.0
  %294 = vmatmul.mubr.f32.gmra.mrb[0].mxu0 %v85
  %v295 = vpop.f32.mrb[0].mxu0
  %v296 = vadd.f32 0.0, %v295
  %v297 = vpop.f32.mrb[0].mxu0
  %v298 = vadd.f32 0.0, %v297
  %299 = vdwg.mxu0
  %v301 = vsel %vm83, %v46, 0
  %303 = vmatprep.subr.mxu0 %v40
  %304 = vmatpush1.msra.mxu0 %v39
  %305 = vmatprep.subr.mxu0 0.0
  %306 = vmatpush1.msra.mxu0 0.0
  %307 = vmatprep.subr.mxu0 0.0
  %308 = vmatpush1.msra.mxu0 0.0
  %309 = vmatprep.subr.mxu0 0.0
  %310 = vmatpush1.msra.mxu0 0.0
  %311 = vmatprep.subr.mxu0 0.0
  %312 = vmatpush1.msra.mxu0 0.0
  %313 = vmatprep.subr.mxu0 0.0
  %314 = vmatpush1.msra.mxu0 0.0
  %315 = vmatprep.subr.mxu0 0.0
  %316 = vmatpush1.msra.mxu0 0.0
  %317 = vmatprep.subr.mxu0 0.0
  %318 = vmatpush1.msra.mxu0 0.0
  %319 = vmatprep.subr.mxu0 0.0
  %320 = vmatpush1.msra.mxu0 0.0
  %321 = vmatprep.subr.mxu0 0.0
  %322 = vmatpush1.msra.mxu0 0.0
  %323 = vmatprep.subr.mxu0 0.0
  %324 = vmatpush1.msra.mxu0 0.0
  %325 = vmatprep.subr.mxu0 0.0
  %326 = vmatpush1.msra.mxu0 0.0
  %327 = vmatprep.subr.mxu0 0.0
  %328 = vmatpush1.msra.mxu0 0.0
  %329 = vmatprep.subr.mxu0 0.0
  %330 = vmatpush1.msra.mxu0 0.0
  %331 = vmatprep.subr.mxu0 0.0
  %332 = vmatpush1.msra.mxu0 0.0
  %333 = vmatprep.subr.mxu0 0.0
  %334 = vmatpush1.msra.mxu0 0.0
  %335 = vmatprep.subr.mxu0 0.0
  %336 = vmatpush1.msra.mxu0 0.0
  %337 = vmatprep.subr.mxu0 0.0
  %338 = vmatpush1.msra.mxu0 0.0
  %339 = vmatprep.subr.mxu0 0.0
  %340 = vmatpush1.msra.mxu0 0.0
  %341 = vmatprep.subr.mxu0 0.0
  %342 = vmatpush1.msra.mxu0 0.0
  %343 = vmatprep.subr.mxu0 0.0
  %344 = vmatpush1.msra.mxu0 0.0
  %345 = vmatprep.subr.mxu0 0.0
  %346 = vmatpush1.msra.mxu0 0.0
  %347 = vmatprep.subr.mxu0 0.0
  %348 = vmatpush1.msra.mxu0 0.0
  %349 = vmatprep.subr.mxu0 0.0
  %350 = vmatpush1.msra.mxu0 0.0
  %351 = vmatprep.subr.mxu0 0.0
  %352 = vmatpush1.msra.mxu0 0.0
  %353 = vmatprep.subr.mxu0 0.0
  %354 = vmatpush1.msra.mxu0 0.0
  %355 = vmatprep.subr.mxu0 0.0
  %356 = vmatpush1.msra.mxu0 0.0
  %357 = vmatprep.subr.mxu0 0.0
  %358 = vmatpush1.msra.mxu0 0.0
  %359 = vmatprep.subr.mxu0 0.0
  %360 = vmatpush1.msra.mxu0 0.0
  %361 = vmatprep.subr.mxu0 0.0
  %362 = vmatpush1.msra.mxu0 0.0
  %363 = vmatprep.subr.mxu0 0.0
  %364 = vmatpush1.msra.mxu0 0.0
  %365 = vmatprep.subr.mxu0 0.0
  %366 = vmatpush1.msra.mxu0 0.0
  %367 = vmatprep.mubr.f32.mxu0 0.0
  %368 = vmatmul.mubr.f32.gmra.mrb[0].mxu0 %v301
  %v369 = vpop.f32.mrb[0].mxu0
  %v370 = vadd.f32 %v154, %v369
  %v371 = vpop.f32.mrb[0].mxu0
  %v372 = vadd.f32 %v156, %v371
  %373 = vdwg.mxu0
  %374 = vmatprep.subr.mxu0 %v42
  %375 = vmatpush1.msra.mxu0 %v41
  %376 = vmatprep.subr.mxu0 0.0
  %377 = vmatpush1.msra.mxu0 0.0
  %378 = vmatprep.subr.mxu0 0.0
  %379 = vmatpush1.msra.mxu0 0.0
  %380 = vmatprep.subr.mxu0 0.0
  %381 = vmatpush1.msra.mxu0 0.0
  %382 = vmatprep.subr.mxu0 0.0
  %383 = vmatpush1.msra.mxu0 0.0
  %384 = vmatprep.subr.mxu0 0.0
  %385 = vmatpush1.msra.mxu0 0.0
  %386 = vmatprep.subr.mxu0 0.0
  %387 = vmatpush1.msra.mxu0 0.0
  %388 = vmatprep.subr.mxu0 0.0
  %389 = vmatpush1.msra.mxu0 0.0
  %390 = vmatprep.subr.mxu0 0.0
  %391 = vmatpush1.msra.mxu0 0.0
  %392 = vmatprep.subr.mxu0 0.0
  %393 = vmatpush1.msra.mxu0 0.0
  %394 = vmatprep.subr.mxu0 0.0
  %395 = vmatpush1.msra.mxu0 0.0
  %396 = vmatprep.subr.mxu0 0.0
  %397 = vmatpush1.msra.mxu0 0.0
  %398 = vmatprep.subr.mxu0 0.0
  %399 = vmatpush1.msra.mxu0 0.0
  %400 = vmatprep.subr.mxu0 0.0
  %401 = vmatpush1.msra.mxu0 0.0
  %402 = vmatprep.subr.mxu0 0.0
  %403 = vmatpush1.msra.mxu0 0.0
  %404 = vmatprep.subr.mxu0 0.0
  %405 = vmatpush1.msra.mxu0 0.0
  %406 = vmatprep.subr.mxu0 0.0
  %407 = vmatpush1.msra.mxu0 0.0
  %408 = vmatprep.subr.mxu0 0.0
  %409 = vmatpush1.msra.mxu0 0.0
  %410 = vmatprep.subr.mxu0 0.0
  %411 = vmatpush1.msra.mxu0 0.0
  %412 = vmatprep.subr.mxu0 0.0
  %413 = vmatpush1.msra.mxu0 0.0
  %414 = vmatprep.subr.mxu0 0.0
  %415 = vmatpush1.msra.mxu0 0.0
  %416 = vmatprep.subr.mxu0 0.0
  %417 = vmatpush1.msra.mxu0 0.0
  %418 = vmatprep.subr.mxu0 0.0
  %419 = vmatpush1.msra.mxu0 0.0
  %420 = vmatprep.subr.mxu0 0.0
  %421 = vmatpush1.msra.mxu0 0.0
  %422 = vmatprep.subr.mxu0 0.0
  %423 = vmatpush1.msra.mxu0 0.0
  %424 = vmatprep.subr.mxu0 0.0
  %425 = vmatpush1.msra.mxu0 0.0
  %426 = vmatprep.subr.mxu0 0.0
  %427 = vmatpush1.msra.mxu0 0.0
  %428 = vmatprep.subr.mxu0 0.0
  %429 = vmatpush1.msra.mxu0 0.0
  %430 = vmatprep.subr.mxu0 0.0
  %431 = vmatpush1.msra.mxu0 0.0
  %432 = vmatprep.subr.mxu0 0.0
  %433 = vmatpush1.msra.mxu0 0.0
  %434 = vmatprep.subr.mxu0 0.0
  %435 = vmatpush1.msra.mxu0 0.0
  %436 = vmatprep.subr.mxu0 0.0
  %437 = vmatpush1.msra.mxu0 0.0
  %438 = vmatprep.mubr.f32.mxu0 0.0
  %439 = vmatmul.mubr.f32.gmra.mrb[0].mxu0 %v301
  %v440 = vpop.f32.mrb[0].mxu0
  %v441 = vadd.f32 %v225, %v440
  %v442 = vpop.f32.mrb[0].mxu0
  %v443 = vadd.f32 %v227, %v442
  %444 = vdwg.mxu0
  %445 = vmatprep.subr.mxu0 %v44
  %446 = vmatpush1.msra.mxu0 %v43
  %447 = vmatprep.subr.mxu0 0.0
  %448 = vmatpush1.msra.mxu0 0.0
  %449 = vmatprep.subr.mxu0 0.0
  %450 = vmatpush1.msra.mxu0 0.0
  %451 = vmatprep.subr.mxu0 0.0
  %452 = vmatpush1.msra.mxu0 0.0
  %453 = vmatprep.subr.mxu0 0.0
  %454 = vmatpush1.msra.mxu0 0.0
  %455 = vmatprep.subr.mxu0 0.0
  %456 = vmatpush1.msra.mxu0 0.0
  %457 = vmatprep.subr.mxu0 0.0
  %458 = vmatpush1.msra.mxu0 0.0
  %459 = vmatprep.subr.mxu0 0.0
  %460 = vmatpush1.msra.mxu0 0.0
  %461 = vmatprep.subr.mxu0 0.0
  %462 = vmatpush1.msra.mxu0 0.0
  %463 = vmatprep.subr.mxu0 0.0
  %464 = vmatpush1.msra.mxu0 0.0
  %465 = vmatprep.subr.mxu0 0.0
  %466 = vmatpush1.msra.mxu0 0.0
  %467 = vmatprep.subr.mxu0 0.0
  %468 = vmatpush1.msra.mxu0 0.0
  %469 = vmatprep.subr.mxu0 0.0
  %470 = vmatpush1.msra.mxu0 0.0
  %471 = vmatprep.subr.mxu0 0.0
  %472 = vmatpush1.msra.mxu0 0.0
  %473 = vmatprep.subr.mxu0 0.0
  %474 = vmatpush1.msra.mxu0 0.0
  %475 = vmatprep.subr.mxu0 0.0
  %476 = vmatpush1.msra.mxu0 0.0
  %477 = vmatprep.subr.mxu0 0.0
  %478 = vmatpush1.msra.mxu0 0.0
  %479 = vmatprep.subr.mxu0 0.0
  %480 = vmatpush1.msra.mxu0 0.0
  %481 = vmatprep.subr.mxu0 0.0
  %482 = vmatpush1.msra.mxu0 0.0
  %483 = vmatprep.subr.mxu0 0.0
  %484 = vmatpush1.msra.mxu0 0.0
  %485 = vmatprep.subr.mxu0 0.0
  %486 = vmatpush1.msra.mxu0 0.0
  %487 = vmatprep.subr.mxu0 0.0
  %488 = vmatpush1.msra.mxu0 0.0
  %489 = vmatprep.subr.mxu0 0.0
  %490 = vmatpush1.msra.mxu0 0.0
  %491 = vmatprep.subr.mxu0 0.0
  %492 = vmatpush1.msra.mxu0 0.0
  %493 = vmatprep.subr.mxu0 0.0
  %494 = vmatpush1.msra.mxu0 0.0
  %495 = vmatprep.subr.mxu0 0.0
  %496 = vmatpush1.msra.mxu0 0.0
  %497 = vmatprep.subr.mxu0 0.0
  %498 = vmatpush1.msra.mxu0 0.0
  %499 = vmatprep.subr.mxu0 0.0
  %500 = vmatpush1.msra.mxu0 0.0
  %501 = vmatprep.subr.mxu0 0.0
  %502 = vmatpush1.msra.mxu0 0.0
  %503 = vmatprep.subr.mxu0 0.0
  %504 = vmatpush1.msra.mxu0 0.0
  %505 = vmatprep.subr.mxu0 0.0
  %506 = vmatpush1.msra.mxu0 0.0
  %507 = vmatprep.subr.mxu0 0.0
  %508 = vmatpush1.msra.mxu0 0.0
  %509 = vmatprep.mubr.f32.mxu0 0.0
  %510 = vmatmul.mubr.f32.gmra.mrb[0].mxu0 %v301
  %v511 = vpop.f32.mrb[0].mxu0
  %v512 = vadd.f32 %v296, %v511
  %v513 = vpop.f32.mrb[0].mxu0
  %v514 = vadd.f32 %v298, %v513
  %515 = vdwg.mxu0
  %s516 = scalar_lea.vmem %s2, 16
  %v517 = vld [vmem:[%s516] sm:$0xff]
  %518 = vrot.lane.b32.xlu0 %v39, 126
  %v519 = vpop.permute.xlu0 %518
  %520 = vrot.lane.b32.xlu0 %v40, 126
  %v521 = vpop.permute.xlu0 %520
  %522 = vrot.lane.b32.xlu0 %v41, 126
  %v523 = vpop.permute.xlu0 %522
  %524 = vrot.lane.b32.xlu0 %v42, 126
  %v525 = vpop.permute.xlu0 %524
  %526 = vrot.lane.b32.xlu0 %v43, 126
  %v527 = vpop.permute.xlu0 %526
  %528 = vrot.lane.b32.xlu0 %v44, 126
  %v529 = vpop.permute.xlu0 %528
  %530 = vrot.lane.b32.xlu0 %v45, 126
  %v531 = vpop.permute.xlu0 %530
  %vm532 = vcmask 1031168
  %v533 = vsel %vm532, %v519, %v521
  %v534 = vsel %vm532, %v521, %v523
  %v535 = vsel %vm532, %v523, %v525
  %v536 = vsel %vm532, %v525, %v527
  %v537 = vsel %vm532, %v527, %v529
  %v538 = vsel %vm532, %v529, %v531
  %v546 = vsel %vm83, %v517, 0
  %548 = vmatprep.subr.mxu0 %v534
  %549 = vmatpush1.msra.mxu0 %v533
  %550 = vmatprep.subr.mxu0 0.0
  %551 = vmatpush1.msra.mxu0 0.0
  %552 = vmatprep.subr.mxu0 0.0
  %553 = vmatpush1.msra.mxu0 0.0
  %554 = vmatprep.subr.mxu0 0.0
  %555 = vmatpush1.msra.mxu0 0.0
  %556 = vmatprep.subr.mxu0 0.0
  %557 = vmatpush1.msra.mxu0 0.0
  %558 = vmatprep.subr.mxu0 0.0
  %559 = vmatpush1.msra.mxu0 0.0
  %560 = vmatprep.subr.mxu0 0.0
  %561 = vmatpush1.msra.mxu0 0.0
  %562 = vmatprep.subr.mxu0 0.0
  %563 = vmatpush1.msra.mxu0 0.0
  %564 = vmatprep.subr.mxu0 0.0
  %565 = vmatpush1.msra.mxu0 0.0
  %566 = vmatprep.subr.mxu0 0.0
  %567 = vmatpush1.msra.mxu0 0.0
  %568 = vmatprep.subr.mxu0 0.0
  %569 = vmatpush1.msra.mxu0 0.0
  %570 = vmatprep.subr.mxu0 0.0
  %571 = vmatpush1.msra.mxu0 0.0
  %572 = vmatprep.subr.mxu0 0.0
  %573 = vmatpush1.msra.mxu0 0.0
  %574 = vmatprep.subr.mxu0 0.0
  %575 = vmatpush1.msra.mxu0 0.0
  %576 = vmatprep.subr.mxu0 0.0
  %577 = vmatpush1.msra.mxu0 0.0
  %578 = vmatprep.subr.mxu0 0.0
  %579 = vmatpush1.msra.mxu0 0.0
  %580 = vmatprep.subr.mxu0 0.0
  %581 = vmatpush1.msra.mxu0 0.0
  %582 = vmatprep.subr.mxu0 0.0
  %583 = vmatpush1.msra.mxu0 0.0
  %584 = vmatprep.subr.mxu0 0.0
  %585 = vmatpush1.msra.mxu0 0.0
  %586 = vmatprep.subr.mxu0 0.0
  %587 = vmatpush1.msra.mxu0 0.0
  %588 = vmatprep.subr.mxu0 0.0
  %589 = vmatpush1.msra.mxu0 0.0
  %590 = vmatprep.subr.mxu0 0.0
  %591 = vmatpush1.msra.mxu0 0.0
  %592 = vmatprep.subr.mxu0 0.0
  %593 = vmatpush1.msra.mxu0 0.0
  %594 = vmatprep.subr.mxu0 0.0
  %595 = vmatpush1.msra.mxu0 0.0
  %596 = vmatprep.subr.mxu0 0.0
  %597 = vmatpush1.msra.mxu0 0.0
  %598 = vmatprep.subr.mxu0 0.0
  %599 = vmatpush1.msra.mxu0 0.0
  %600 = vmatprep.subr.mxu0 0.0
  %601 = vmatpush1.msra.mxu0 0.0
  %602 = vmatprep.subr.mxu0 0.0
  %603 = vmatpush1.msra.mxu0 0.0
  %604 = vmatprep.subr.mxu0 0.0
  %605 = vmatpush1.msra.mxu0 0.0
  %606 = vmatprep.subr.mxu0 0.0
  %607 = vmatpush1.msra.mxu0 0.0
  %608 = vmatprep.subr.mxu0 0.0
  %609 = vmatpush1.msra.mxu0 0.0
  %610 = vmatprep.subr.mxu0 0.0
  %611 = vmatpush1.msra.mxu0 0.0
  %612 = vmatprep.mubr.f32.mxu0 0.0
  %613 = vmatmul.mubr.f32.gmra.mrb[0].mxu0 %v546
  %v614 = vpop.f32.mrb[0].mxu0
  %v615 = vadd.f32 0.0, %v614
  %v616 = vpop.f32.mrb[0].mxu0
  %v617 = vadd.f32 0.0, %v616
  %618 = vdwg.mxu0
  %619 = vmatprep.subr.mxu0 %v536
  %620 = vmatpush1.msra.mxu0 %v535
  %621 = vmatprep.subr.mxu0 0.0
  %622 = vmatpush1.msra.mxu0 0.0
  %623 = vmatprep.subr.mxu0 0.0
  %624 = vmatpush1.msra.mxu0 0.0
  %625 = vmatprep.subr.mxu0 0.0
  %626 = vmatpush1.msra.mxu0 0.0
  %627 = vmatprep.subr.mxu0 0.0
  %628 = vmatpush1.msra.mxu0 0.0
  %629 = vmatprep.subr.mxu0 0.0
  %630 = vmatpush1.msra.mxu0 0.0
  %631 = vmatprep.subr.mxu0 0.0
  %632 = vmatpush1.msra.mxu0 0.0
  %633 = vmatprep.subr.mxu0 0.0
  %634 = vmatpush1.msra.mxu0 0.0
  %635 = vmatprep.subr.mxu0 0.0
  %636 = vmatpush1.msra.mxu0 0.0
  %637 = vmatprep.subr.mxu0 0.0
  %638 = vmatpush1.msra.mxu0 0.0
  %639 = vmatprep.subr.mxu0 0.0
  %640 = vmatpush1.msra.mxu0 0.0
  %641 = vmatprep.subr.mxu0 0.0
  %642 = vmatpush1.msra.mxu0 0.0
  %643 = vmatprep.subr.mxu0 0.0
  %644 = vmatpush1.msra.mxu0 0.0
  %645 = vmatprep.subr.mxu0 0.0
  %646 = vmatpush1.msra.mxu0 0.0
  %647 = vmatprep.subr.mxu0 0.0
  %648 = vmatpush1.msra.mxu0 0.0
  %649 = vmatprep.subr.mxu0 0.0
  %650 = vmatpush1.msra.mxu0 0.0
  %651 = vmatprep.subr.mxu0 0.0
  %652 = vmatpush1.msra.mxu0 0.0
  %653 = vmatprep.subr.mxu0 0.0
  %654 = vmatpush1.msra.mxu0 0.0
  %655 = vmatprep.subr.mxu0 0.0
  %656 = vmatpush1.msra.mxu0 0.0
  %657 = vmatprep.subr.mxu0 0.0
  %658 = vmatpush1.msra.mxu0 0.0
  %659 = vmatprep.subr.mxu0 0.0
  %660 = vmatpush1.msra.mxu0 0.0
  %661 = vmatprep.subr.mxu0 0.0
  %662 = vmatpush1.msra.mxu0 0.0
  %663 = vmatprep.subr.mxu0 0.0
  %664 = vmatpush1.msra.mxu0 0.0
  %665 = vmatprep.subr.mxu0 0.0
  %666 = vmatpush1.msra.mxu0 0.0
  %667 = vmatprep.subr.mxu0 0.0
  %668 = vmatpush1.msra.mxu0 0.0
  %669 = vmatprep.subr.mxu0 0.0
  %670 = vmatpush1.msra.mxu0 0.0
  %671 = vmatprep.subr.mxu0 0.0
  %672 = vmatpush1.msra.mxu0 0.0
  %673 = vmatprep.subr.mxu0 0.0
  %674 = vmatpush1.msra.mxu0 0.0
  %675 = vmatprep.subr.mxu0 0.0
  %676 = vmatpush1.msra.mxu0 0.0
  %677 = vmatprep.subr.mxu0 0.0
  %678 = vmatpush1.msra.mxu0 0.0
  %679 = vmatprep.subr.mxu0 0.0
  %680 = vmatpush1.msra.mxu0 0.0
  %681 = vmatprep.subr.mxu0 0.0
  %682 = vmatpush1.msra.mxu0 0.0
  %683 = vmatprep.mubr.f32.mxu0 0.0
  %684 = vmatmul.mubr.f32.gmra.mrb[0].mxu0 %v546
  %v685 = vpop.f32.mrb[0].mxu0
  %v686 = vadd.f32 0.0, %v685
  %v687 = vpop.f32.mrb[0].mxu0
  %v688 = vadd.f32 0.0, %v687
  %689 = vdwg.mxu0
  %690 = vmatprep.subr.mxu0 %v538
  %691 = vmatpush1.msra.mxu0 %v537
  %692 = vmatprep.subr.mxu0 0.0
  %693 = vmatpush1.msra.mxu0 0.0
  %694 = vmatprep.subr.mxu0 0.0
  %695 = vmatpush1.msra.mxu0 0.0
  %696 = vmatprep.subr.mxu0 0.0
  %697 = vmatpush1.msra.mxu0 0.0
  %698 = vmatprep.subr.mxu0 0.0
  %699 = vmatpush1.msra.mxu0 0.0
  %700 = vmatprep.subr.mxu0 0.0
  %701 = vmatpush1.msra.mxu0 0.0
  %702 = vmatprep.subr.mxu0 0.0
  %703 = vmatpush1.msra.mxu0 0.0
  %704 = vmatprep.subr.mxu0 0.0
  %705 = vmatpush1.msra.mxu0 0.0
  %706 = vmatprep.subr.mxu0 0.0
  %707 = vmatpush1.msra.mxu0 0.0
  %708 = vmatprep.subr.mxu0 0.0
  %709 = vmatpush1.msra.mxu0 0.0
  %710 = vmatprep.subr.mxu0 0.0
  %711 = vmatpush1.msra.mxu0 0.0
  %712 = vmatprep.subr.mxu0 0.0
  %713 = vmatpush1.msra.mxu0 0.0
  %714 = vmatprep.subr.mxu0 0.0
  %715 = vmatpush1.msra.mxu0 0.0
  %716 = vmatprep.subr.mxu0 0.0
  %717 = vmatpush1.msra.mxu0 0.0
  %718 = vmatprep.subr.mxu0 0.0
  %719 = vmatpush1.msra.mxu0 0.0
  %720 = vmatprep.subr.mxu0 0.0
  %721 = vmatpush1.msra.mxu0 0.0
  %722 = vmatprep.subr.mxu0 0.0
  %723 = vmatpush1.msra.mxu0 0.0
  %724 = vmatprep.subr.mxu0 0.0
  %725 = vmatpush1.msra.mxu0 0.0
  %726 = vmatprep.subr.mxu0 0.0
  %727 = vmatpush1.msra.mxu0 0.0
  %728 = vmatprep.subr.mxu0 0.0
  %729 = vmatpush1.msra.mxu0 0.0
  %730 = vmatprep.subr.mxu0 0.0
  %731 = vmatpush1.msra.mxu0 0.0
  %732 = vmatprep.subr.mxu0 0.0
  %733 = vmatpush1.msra.mxu0 0.0
  %734 = vmatprep.subr.mxu0 0.0
  %735 = vmatpush1.msra.mxu0 0.0
  %736 = vmatprep.subr.mxu0 0.0
  %737 = vmatpush1.msra.mxu0 0.0
  %738 = vmatprep.subr.mxu0 0.0
  %739 = vmatpush1.msra.mxu0 0.0
  %740 = vmatprep.subr.mxu0 0.0
  %741 = vmatpush1.msra.mxu0 0.0
  %742 = vmatprep.subr.mxu0 0.0
  %743 = vmatpush1.msra.mxu0 0.0
  %744 = vmatprep.subr.mxu0 0.0
  %745 = vmatpush1.msra.mxu0 0.0
  %746 = vmatprep.subr.mxu0 0.0
  %747 = vmatpush1.msra.mxu0 0.0
  %748 = vmatprep.subr.mxu0 0.0
  %749 = vmatpush1.msra.mxu0 0.0
  %750 = vmatprep.subr.mxu0 0.0
  %751 = vmatpush1.msra.mxu0 0.0
  %752 = vmatprep.subr.mxu0 0.0
  %753 = vmatpush1.msra.mxu0 0.0
  %754 = vmatprep.mubr.f32.mxu0 0.0
  %755 = vmatmul.mubr.f32.gmra.mrb[0].mxu0 %v546
  %v756 = vpop.f32.mrb[0].mxu0
  %v757 = vadd.f32 0.0, %v756
  %v758 = vpop.f32.mrb[0].mxu0
  %v759 = vadd.f32 0.0, %v758
  %760 = vdwg.mxu0
  %v761 = vadd.f32 %v370, %v615
  %v762 = vadd.f32 %v372, %v617
  %v763 = vadd.f32 %v441, %v686
  %v764 = vadd.f32 %v443, %v688
  %v765 = vadd.f32 %v512, %v757
  %v766 = vadd.f32 %v514, %v759
  %s767 = scalar_lea.vmem %s2, 24
  %v768 = vld [vmem:[%s767] sm:$0xff]
  %769 = vrot.lane.b32.xlu0 %v39, 110
  %v770 = vpop.permute.xlu0 %769
  %771 = vrot.lane.b32.xlu0 %v40, 110
  %v772 = vpop.permute.xlu0 %771
  %773 = vrot.lane.b32.xlu0 %v41, 110
  %v774 = vpop.permute.xlu0 %773
  %775 = vrot.lane.b32.xlu0 %v42, 110
  %v776 = vpop.permute.xlu0 %775
  %777 = vrot.lane.b32.xlu0 %v43, 110
  %v778 = vpop.permute.xlu0 %777
  %779 = vrot.lane.b32.xlu0 %v44, 110
  %v780 = vpop.permute.xlu0 %779
  %781 = vrot.lane.b32.xlu0 %v45, 110
  %v782 = vpop.permute.xlu0 %781
  %vm783 = vcmask 900096
  %v784 = vsel %vm783, %v770, %v772
  %v785 = vsel %vm783, %v772, %v774
  %v786 = vsel %vm783, %v774, %v776
  %v787 = vsel %vm783, %v776, %v778
  %v788 = vsel %vm783, %v778, %v780
  %v789 = vsel %vm783, %v780, %v782
  %v797 = vsel %vm83, %v768, 0
  %799 = vmatprep.subr.mxu0 %v785
  %800 = vmatpush1.msra.mxu0 %v784
  %801 = vmatprep.subr.mxu0 0.0
  %802 = vmatpush1.msra.mxu0 0.0
  %803 = vmatprep.subr.mxu0 0.0
  %804 = vmatpush1.msra.mxu0 0.0
  %805 = vmatprep.subr.mxu0 0.0
  %806 = vmatpush1.msra.mxu0 0.0
  %807 = vmatprep.subr.mxu0 0.0
  %808 = vmatpush1.msra.mxu0 0.0
  %809 = vmatprep.subr.mxu0 0.0
  %810 = vmatpush1.msra.mxu0 0.0
  %811 = vmatprep.subr.mxu0 0.0
  %812 = vmatpush1.msra.mxu0 0.0
  %813 = vmatprep.subr.mxu0 0.0
  %814 = vmatpush1.msra.mxu0 0.0
  %815 = vmatprep.subr.mxu0 0.0
  %816 = vmatpush1.msra.mxu0 0.0
  %817 = vmatprep.subr.mxu0 0.0
  %818 = vmatpush1.msra.mxu0 0.0
  %819 = vmatprep.subr.mxu0 0.0
  %820 = vmatpush1.msra.mxu0 0.0
  %821 = vmatprep.subr.mxu0 0.0
  %822 = vmatpush1.msra.mxu0 0.0
  %823 = vmatprep.subr.mxu0 0.0
  %824 = vmatpush1.msra.mxu0 0.0
  %825 = vmatprep.subr.mxu0 0.0
  %826 = vmatpush1.msra.mxu0 0.0
  %827 = vmatprep.subr.mxu0 0.0
  %828 = vmatpush1.msra.mxu0 0.0
  %829 = vmatprep.subr.mxu0 0.0
  %830 = vmatpush1.msra.mxu0 0.0
  %831 = vmatprep.subr.mxu0 0.0
  %832 = vmatpush1.msra.mxu0 0.0
  %833 = vmatprep.subr.mxu0 0.0
  %834 = vmatpush1.msra.mxu0 0.0
  %835 = vmatprep.subr.mxu0 0.0
  %836 = vmatpush1.msra.mxu0 0.0
  %837 = vmatprep.subr.mxu0 0.0
  %838 = vmatpush1.msra.mxu0 0.0
  %839 = vmatprep.subr.mxu0 0.0
  %840 = vmatpush1.msra.mxu0 0.0
  %841 = vmatprep.subr.mxu0 0.0
  %842 = vmatpush1.msra.mxu0 0.0
  %843 = vmatprep.subr.mxu0 0.0
  %844 = vmatpush1.msra.mxu0 0.0
  %845 = vmatprep.subr.mxu0 0.0
  %846 = vmatpush1.msra.mxu0 0.0
  %847 = vmatprep.subr.mxu0 0.0
  %848 = vmatpush1.msra.mxu0 0.0
  %849 = vmatprep.subr.mxu0 0.0
  %850 = vmatpush1.msra.mxu0 0.0
  %851 = vmatprep.subr.mxu0 0.0
  %852 = vmatpush1.msra.mxu0 0.0
  %853 = vmatprep.subr.mxu0 0.0
  %854 = vmatpush1.msra.mxu0 0.0
  %855 = vmatprep.subr.mxu0 0.0
  %856 = vmatpush1.msra.mxu0 0.0
  %857 = vmatprep.subr.mxu0 0.0
  %858 = vmatpush1.msra.mxu0 0.0
  %859 = vmatprep.subr.mxu0 0.0
  %860 = vmatpush1.msra.mxu0 0.0
  %861 = vmatprep.subr.mxu0 0.0
  %862 = vmatpush1.msra.mxu0 0.0
  %863 = vmatprep.mubr.f32.mxu0 0.0
  %864 = vmatmul.mubr.f32.gmra.mrb[0].mxu0 %v797
  %v865 = vpop.f32.mrb[0].mxu0
  %v866 = vadd.f32 0.0, %v865
  %v867 = vpop.f32.mrb[0].mxu0
  %v868 = vadd.f32 0.0, %v867
  %869 = vdwg.mxu0
  %870 = vmatprep.subr.mxu0 %v787
  %871 = vmatpush1.msra.mxu0 %v786
  %872 = vmatprep.subr.mxu0 0.0
  %873 = vmatpush1.msra.mxu0 0.0
  %874 = vmatprep.subr.mxu0 0.0
  %875 = vmatpush1.msra.mxu0 0.0
  %876 = vmatprep.subr.mxu0 0.0
  %877 = vmatpush1.msra.mxu0 0.0
  %878 = vmatprep.subr.mxu0 0.0
  %879 = vmatpush1.msra.mxu0 0.0
  %880 = vmatprep.subr.mxu0 0.0
  %881 = vmatpush1.msra.mxu0 0.0
  %882 = vmatprep.subr.mxu0 0.0
  %883 = vmatpush1.msra.mxu0 0.0
  %884 = vmatprep.subr.mxu0 0.0
  %885 = vmatpush1.msra.mxu0 0.0
  %886 = vmatprep.subr.mxu0 0.0
  %887 = vmatpush1.msra.mxu0 0.0
  %888 = vmatprep.subr.mxu0 0.0
  %889 = vmatpush1.msra.mxu0 0.0
  %890 = vmatprep.subr.mxu0 0.0
  %891 = vmatpush1.msra.mxu0 0.0
  %892 = vmatprep.subr.mxu0 0.0
  %893 = vmatpush1.msra.mxu0 0.0
  %894 = vmatprep.subr.mxu0 0.0
  %895 = vmatpush1.msra.mxu0 0.0
  %896 = vmatprep.subr.mxu0 0.0
  %897 = vmatpush1.msra.mxu0 0.0
  %898 = vmatprep.subr.mxu0 0.0
  %899 = vmatpush1.msra.mxu0 0.0
  %900 = vmatprep.subr.mxu0 0.0
  %901 = vmatpush1.msra.mxu0 0.0
  %902 = vmatprep.subr.mxu0 0.0
  %903 = vmatpush1.msra.mxu0 0.0
  %904 = vmatprep.subr.mxu0 0.0
  %905 = vmatpush1.msra.mxu0 0.0
  %906 = vmatprep.subr.mxu0 0.0
  %907 = vmatpush1.msra.mxu0 0.0
  %908 = vmatprep.subr.mxu0 0.0
  %909 = vmatpush1.msra.mxu0 0.0
  %910 = vmatprep.subr.mxu0 0.0
  %911 = vmatpush1.msra.mxu0 0.0
  %912 = vmatprep.subr.mxu0 0.0
  %913 = vmatpush1.msra.mxu0 0.0
  %914 = vmatprep.subr.mxu0 0.0
  %915 = vmatpush1.msra.mxu0 0.0
  %916 = vmatprep.subr.mxu0 0.0
  %917 = vmatpush1.msra.mxu0 0.0
  %918 = vmatprep.subr.mxu0 0.0
  %919 = vmatpush1.msra.mxu0 0.0
  %920 = vmatprep.subr.mxu0 0.0
  %921 = vmatpush1.msra.mxu0 0.0
  %922 = vmatprep.subr.mxu0 0.0
  %923 = vmatpush1.msra.mxu0 0.0
  %924 = vmatprep.subr.mxu0 0.0
  %925 = vmatpush1.msra.mxu0 0.0
  %926 = vmatprep.subr.mxu0 0.0
  %927 = vmatpush1.msra.mxu0 0.0
  %928 = vmatprep.subr.mxu0 0.0
  %929 = vmatpush1.msra.mxu0 0.0
  %930 = vmatprep.subr.mxu0 0.0
  %931 = vmatpush1.msra.mxu0 0.0
  %932 = vmatprep.subr.mxu0 0.0
  %933 = vmatpush1.msra.mxu0 0.0
  %934 = vmatprep.mubr.f32.mxu0 0.0
  %935 = vmatmul.mubr.f32.gmra.mrb[0].mxu0 %v797
  %v936 = vpop.f32.mrb[0].mxu0
  %v937 = vadd.f32 0.0, %v936
  %v938 = vpop.f32.mrb[0].mxu0
  %v939 = vadd.f32 0.0, %v938
  %940 = vdwg.mxu0
  %941 = vmatprep.subr.mxu0 %v789
  %942 = vmatpush1.msra.mxu0 %v788
  %943 = vmatprep.subr.mxu0 0.0
  %944 = vmatpush1.msra.mxu0 0.0
  %945 = vmatprep.subr.mxu0 0.0
  %946 = vmatpush1.msra.mxu0 0.0
  %947 = vmatprep.subr.mxu0 0.0
  %948 = vmatpush1.msra.mxu0 0.0
  %949 = vmatprep.subr.mxu0 0.0
  %950 = vmatpush1.msra.mxu0 0.0
  %951 = vmatprep.subr.mxu0 0.0
  %952 = vmatpush1.msra.mxu0 0.0
  %953 = vmatprep.subr.mxu0 0.0
  %954 = vmatpush1.msra.mxu0 0.0
  %955 = vmatprep.subr.mxu0 0.0
  %956 = vmatpush1.msra.mxu0 0.0
  %957 = vmatprep.subr.mxu0 0.0
  %958 = vmatpush1.msra.mxu0 0.0
  %959 = vmatprep.subr.mxu0 0.0
  %960 = vmatpush1.msra.mxu0 0.0
  %961 = vmatprep.subr.mxu0 0.0
  %962 = vmatpush1.msra.mxu0 0.0
  %963 = vmatprep.subr.mxu0 0.0
  %964 = vmatpush1.msra.mxu0 0.0
  %965 = vmatprep.subr.mxu0 0.0
  %966 = vmatpush1.msra.mxu0 0.0
  %967 = vmatprep.subr.mxu0 0.0
  %968 = vmatpush1.msra.mxu0 0.0
  %969 = vmatprep.subr.mxu0 0.0
  %970 = vmatpush1.msra.mxu0 0.0
  %971 = vmatprep.subr.mxu0 0.0
  %972 = vmatpush1.msra.mxu0 0.0
  %973 = vmatprep.subr.mxu0 0.0
  %974 = vmatpush1.msra.mxu0 0.0
  %975 = vmatprep.subr.mxu0 0.0
  %976 = vmatpush1.msra.mxu0 0.0
  %977 = vmatprep.subr.mxu0 0.0
  %978 = vmatpush1.msra.mxu0 0.0
  %979 = vmatprep.subr.mxu0 0.0
  %980 = vmatpush1.msra.mxu0 0.0
  %981 = vmatprep.subr.mxu0 0.0
  %982 = vmatpush1.msra.mxu0 0.0
  %983 = vmatprep.subr.mxu0 0.0
  %984 = vmatpush1.msra.mxu0 0.0
  %985 = vmatprep.subr.mxu0 0.0
  %986 = vmatpush1.msra.mxu0 0.0
  %987 = vmatprep.subr.mxu0 0.0
  %988 = vmatpush1.msra.mxu0 0.0
  %989 = vmatprep.subr.mxu0 0.0
  %990 = vmatpush1.msra.mxu0 0.0
  %991 = vmatprep.subr.mxu0 0.0
  %992 = vmatpush1.msra.mxu0 0.0
  %993 = vmatprep.subr.mxu0 0.0
  %994 = vmatpush1.msra.mxu0 0.0
  %995 = vmatprep.subr.mxu0 0.0
  %996 = vmatpush1.msra.mxu0 0.0
  %997 = vmatprep.subr.mxu0 0.0
  %998 = vmatpush1.msra.mxu0 0.0
  %999 = vmatprep.subr.mxu0 0.0
  %1000 = vmatpush1.msra.mxu0 0.0
  %1001 = vmatprep.subr.mxu0 0.0
  %1002 = vmatpush1.msra.mxu0 0.0
  %1003 = vmatprep.subr.mxu0 0.0
  %1004 = vmatpush1.msra.mxu0 0.0
  %1005 = vmatprep.mubr.f32.mxu0 0.0
  %1006 = vmatmul.mubr.f32.gmra.mrb[0].mxu0 %v797
  %v1007 = vpop.f32.mrb[0].mxu0
  %v1008 = vadd.f32 0.0, %v1007
  %v1009 = vpop.f32.mrb[0].mxu0
  %v1010 = vadd.f32 0.0, %v1009
  %1011 = vdwg.mxu0
  %v1012 = vadd.f32 %v761, %v866
  %v1013 = vadd.f32 %v762, %v868
  %v1014 = vadd.f32 %v763, %v937
  %v1015 = vadd.f32 %v764, %v939
  %v1016 = vadd.f32 %v765, %v1008
  %v1017 = vadd.f32 %v766, %v1010
  %s1018 = scalar_lea.vmem %s2, 32
  %v1019 = vld [vmem:[%s1018] sm:$0xff]
  %1020 = vrot.lane.b32.xlu0 %v39, 109
  %v1021 = vpop.permute.xlu0 %1020
  %1022 = vrot.lane.b32.xlu0 %v40, 109
  %v1023 = vpop.permute.xlu0 %1022
  %1024 = vrot.lane.b32.xlu0 %v41, 109
  %v1025 = vpop.permute.xlu0 %1024
  %1026 = vrot.lane.b32.xlu0 %v42, 109
  %v1027 = vpop.permute.xlu0 %1026
  %1028 = vrot.lane.b32.xlu0 %v43, 109
  %v1029 = vpop.permute.xlu0 %1028
  %1030 = vrot.lane.b32.xlu0 %v44, 109
  %v1031 = vpop.permute.xlu0 %1030
  %1032 = vrot.lane.b32.xlu0 %v45, 109
  %v1033 = vpop.permute.xlu0 %1032
  %vm1034 = vcmask 891904
  %v1035 = vsel %vm1034, %v1021, %v1023
  %v1036 = vsel %vm1034, %v1023, %v1025
  %v1037 = vsel %vm1034, %v1025, %v1027
  %v1038 = vsel %vm1034, %v1027, %v1029
  %v1039 = vsel %vm1034, %v1029, %v1031
  %v1040 = vsel %vm1034, %v1031, %v1033
  %v1048 = vsel %vm83, %v1019, 0
  %1050 = vmatprep.subr.mxu0 %v1036
  %1051 = vmatpush1.msra.mxu0 %v1035
  %1052 = vmatprep.subr.mxu0 0.0
  %1053 = vmatpush1.msra.mxu0 0.0
  %1054 = vmatprep.subr.mxu0 0.0
  %1055 = vmatpush1.msra.mxu0 0.0
  %1056 = vmatprep.subr.mxu0 0.0
  %1057 = vmatpush1.msra.mxu0 0.0
  %1058 = vmatprep.subr.mxu0 0.0
  %1059 = vmatpush1.msra.mxu0 0.0
  %1060 = vmatprep.subr.mxu0 0.0
  %1061 = vmatpush1.msra.mxu0 0.0
  %1062 = vmatprep.subr.mxu0 0.0
  %1063 = vmatpush1.msra.mxu0 0.0
  %1064 = vmatprep.subr.mxu0 0.0
  %1065 = vmatpush1.msra.mxu0 0.0
  %1066 = vmatprep.subr.mxu0 0.0
  %1067 = vmatpush1.msra.mxu0 0.0
  %1068 = vmatprep.subr.mxu0 0.0
  %1069 = vmatpush1.msra.mxu0 0.0
  %1070 = vmatprep.subr.mxu0 0.0
  %1071 = vmatpush1.msra.mxu0 0.0
  %1072 = vmatprep.subr.mxu0 0.0
  %1073 = vmatpush1.msra.mxu0 0.0
  %1074 = vmatprep.subr.mxu0 0.0
  %1075 = vmatpush1.msra.mxu0 0.0
  %1076 = vmatprep.subr.mxu0 0.0
  %1077 = vmatpush1.msra.mxu0 0.0
  %1078 = vmatprep.subr.mxu0 0.0
  %1079 = vmatpush1.msra.mxu0 0.0
  %1080 = vmatprep.subr.mxu0 0.0
  %1081 = vmatpush1.msra.mxu0 0.0
  %1082 = vmatprep.subr.mxu0 0.0
  %1083 = vmatpush1.msra.mxu0 0.0
  %1084 = vmatprep.subr.mxu0 0.0
  %1085 = vmatpush1.msra.mxu0 0.0
  %1086 = vmatprep.subr.mxu0 0.0
  %1087 = vmatpush1.msra.mxu0 0.0
  %1088 = vmatprep.subr.mxu0 0.0
  %1089 = vmatpush1.msra.mxu0 0.0
  %1090 = vmatprep.subr.mxu0 0.0
  %1091 = vmatpush1.msra.mxu0 0.0
  %1092 = vmatprep.subr.mxu0 0.0
  %1093 = vmatpush1.msra.mxu0 0.0
  %1094 = vmatprep.subr.mxu0 0.0
  %1095 = vmatpush1.msra.mxu0 0.0
  %1096 = vmatprep.subr.mxu0 0.0
  %1097 = vmatpush1.msra.mxu0 0.0
  %1098 = vmatprep.subr.mxu0 0.0
  %1099 = vmatpush1.msra.mxu0 0.0
  %1100 = vmatprep.subr.mxu0 0.0
  %1101 = vmatpush1.msra.mxu0 0.0
  %1102 = vmatprep.subr.mxu0 0.0
  %1103 = vmatpush1.msra.mxu0 0.0
  %1104 = vmatprep.subr.mxu0 0.0
  %1105 = vmatpush1.msra.mxu0 0.0
  %1106 = vmatprep.subr.mxu0 0.0
  %1107 = vmatpush1.msra.mxu0 0.0
  %1108 = vmatprep.subr.mxu0 0.0
  %1109 = vmatpush1.msra.mxu0 0.0
  %1110 = vmatprep.subr.mxu0 0.0
  %1111 = vmatpush1.msra.mxu0 0.0
  %1112 = vmatprep.subr.mxu0 0.0
  %1113 = vmatpush1.msra.mxu0 0.0
  %1114 = vmatprep.mubr.f32.mxu0 0.0
  %1115 = vmatmul.mubr.f32.gmra.mrb[0].mxu0 %v1048
  %v1116 = vpop.f32.mrb[0].mxu0
  %v1117 = vadd.f32 0.0, %v1116
  %v1118 = vpop.f32.mrb[0].mxu0
  %v1119 = vadd.f32 0.0, %v1118
  %1120 = vdwg.mxu0
  %1121 = vmatprep.subr.mxu0 %v1038
  %1122 = vmatpush1.msra.mxu0 %v1037
  %1123 = vmatprep.subr.mxu0 0.0
  %1124 = vmatpush1.msra.mxu0 0.0
  %1125 = vmatprep.subr.mxu0 0.0
  %1126 = vmatpush1.msra.mxu0 0.0
  %1127 = vmatprep.subr.mxu0 0.0
  %1128 = vmatpush1.msra.mxu0 0.0
  %1129 = vmatprep.subr.mxu0 0.0
  %1130 = vmatpush1.msra.mxu0 0.0
  %1131 = vmatprep.subr.mxu0 0.0
  %1132 = vmatpush1.msra.mxu0 0.0
  %1133 = vmatprep.subr.mxu0 0.0
  %1134 = vmatpush1.msra.mxu0 0.0
  %1135 = vmatprep.subr.mxu0 0.0
  %1136 = vmatpush1.msra.mxu0 0.0
  %1137 = vmatprep.subr.mxu0 0.0
  %1138 = vmatpush1.msra.mxu0 0.0
  %1139 = vmatprep.subr.mxu0 0.0
  %1140 = vmatpush1.msra.mxu0 0.0
  %1141 = vmatprep.subr.mxu0 0.0
  %1142 = vmatpush1.msra.mxu0 0.0
  %1143 = vmatprep.subr.mxu0 0.0
  %1144 = vmatpush1.msra.mxu0 0.0
  %1145 = vmatprep.subr.mxu0 0.0
  %1146 = vmatpush1.msra.mxu0 0.0
  %1147 = vmatprep.subr.mxu0 0.0
  %1148 = vmatpush1.msra.mxu0 0.0
  %1149 = vmatprep.subr.mxu0 0.0
  %1150 = vmatpush1.msra.mxu0 0.0
  %1151 = vmatprep.subr.mxu0 0.0
  %1152 = vmatpush1.msra.mxu0 0.0
  %1153 = vmatprep.subr.mxu0 0.0
  %1154 = vmatpush1.msra.mxu0 0.0
  %1155 = vmatprep.subr.mxu0 0.0
  %1156 = vmatpush1.msra.mxu0 0.0
  %1157 = vmatprep.subr.mxu0 0.0
  %1158 = vmatpush1.msra.mxu0 0.0
  %1159 = vmatprep.subr.mxu0 0.0
  %1160 = vmatpush1.msra.mxu0 0.0
  %1161 = vmatprep.subr.mxu0 0.0
  %1162 = vmatpush1.msra.mxu0 0.0
  %1163 = vmatprep.subr.mxu0 0.0
  %1164 = vmatpush1.msra.mxu0 0.0
  %1165 = vmatprep.subr.mxu0 0.0
  %1166 = vmatpush1.msra.mxu0 0.0
  %1167 = vmatprep.subr.mxu0 0.0
  %1168 = vmatpush1.msra.mxu0 0.0
  %1169 = vmatprep.subr.mxu0 0.0
  %1170 = vmatpush1.msra.mxu0 0.0
  %1171 = vmatprep.subr.mxu0 0.0
  %1172 = vmatpush1.msra.mxu0 0.0
  %1173 = vmatprep.subr.mxu0 0.0
  %1174 = vmatpush1.msra.mxu0 0.0
  %1175 = vmatprep.subr.mxu0 0.0
  %1176 = vmatpush1.msra.mxu0 0.0
  %1177 = vmatprep.subr.mxu0 0.0
  %1178 = vmatpush1.msra.mxu0 0.0
  %1179 = vmatprep.subr.mxu0 0.0
  %1180 = vmatpush1.msra.mxu0 0.0
  %1181 = vmatprep.subr.mxu0 0.0
  %1182 = vmatpush1.msra.mxu0 0.0
  %1183 = vmatprep.subr.mxu0 0.0
  %1184 = vmatpush1.msra.mxu0 0.0
  %1185 = vmatprep.mubr.f32.mxu0 0.0
  %1186 = vmatmul.mubr.f32.gmra.mrb[0].mxu0 %v1048
  %v1187 = vpop.f32.mrb[0].mxu0
  %v1188 = vadd.f32 0.0, %v1187
  %v1189 = vpop.f32.mrb[0].mxu0
  %v1190 = vadd.f32 0.0, %v1189
  %1191 = vdwg.mxu0
  %1192 = vmatprep.subr.mxu0 %v1040
  %1193 = vmatpush1.msra.mxu0 %v1039
  %1194 = vmatprep.subr.mxu0 0.0
  %1195 = vmatpush1.msra.mxu0 0.0
  %1196 = vmatprep.subr.mxu0 0.0
  %1197 = vmatpush1.msra.mxu0 0.0
  %1198 = vmatprep.subr.mxu0 0.0
  %1199 = vmatpush1.msra.mxu0 0.0
  %1200 = vmatprep.subr.mxu0 0.0
  %1201 = vmatpush1.msra.mxu0 0.0
  %1202 = vmatprep.subr.mxu0 0.0
  %1203 = vmatpush1.msra.mxu0 0.0
  %1204 = vmatprep.subr.mxu0 0.0
  %1205 = vmatpush1.msra.mxu0 0.0
  %1206 = vmatprep.subr.mxu0 0.0
  %1207 = vmatpush1.msra.mxu0 0.0
  %1208 = vmatprep.subr.mxu0 0.0
  %1209 = vmatpush1.msra.mxu0 0.0
  %1210 = vmatprep.subr.mxu0 0.0
  %1211 = vmatpush1.msra.mxu0 0.0
  %1212 = vmatprep.subr.mxu0 0.0
  %1213 = vmatpush1.msra.mxu0 0.0
  %1214 = vmatprep.subr.mxu0 0.0
  %1215 = vmatpush1.msra.mxu0 0.0
  %1216 = vmatprep.subr.mxu0 0.0
  %1217 = vmatpush1.msra.mxu0 0.0
  %1218 = vmatprep.subr.mxu0 0.0
  %1219 = vmatpush1.msra.mxu0 0.0
  %1220 = vmatprep.subr.mxu0 0.0
  %1221 = vmatpush1.msra.mxu0 0.0
  %1222 = vmatprep.subr.mxu0 0.0
  %1223 = vmatpush1.msra.mxu0 0.0
  %1224 = vmatprep.subr.mxu0 0.0
  %1225 = vmatpush1.msra.mxu0 0.0
  %1226 = vmatprep.subr.mxu0 0.0
  %1227 = vmatpush1.msra.mxu0 0.0
  %1228 = vmatprep.subr.mxu0 0.0
  %1229 = vmatpush1.msra.mxu0 0.0
  %1230 = vmatprep.subr.mxu0 0.0
  %1231 = vmatpush1.msra.mxu0 0.0
  %1232 = vmatprep.subr.mxu0 0.0
  %1233 = vmatpush1.msra.mxu0 0.0
  %1234 = vmatprep.subr.mxu0 0.0
  %1235 = vmatpush1.msra.mxu0 0.0
  %1236 = vmatprep.subr.mxu0 0.0
  %1237 = vmatpush1.msra.mxu0 0.0
  %1238 = vmatprep.subr.mxu0 0.0
  %1239 = vmatpush1.msra.mxu0 0.0
  %1240 = vmatprep.subr.mxu0 0.0
  %1241 = vmatpush1.msra.mxu0 0.0
  %1242 = vmatprep.subr.mxu0 0.0
  %1243 = vmatpush1.msra.mxu0 0.0
  %1244 = vmatprep.subr.mxu0 0.0
  %1245 = vmatpush1.msra.mxu0 0.0
  %1246 = vmatprep.subr.mxu0 0.0
  %1247 = vmatpush1.msra.mxu0 0.0
  %1248 = vmatprep.subr.mxu0 0.0
  %1249 = vmatpush1.msra.mxu0 0.0
  %1250 = vmatprep.subr.mxu0 0.0
  %1251 = vmatpush1.msra.mxu0 0.0
  %1252 = vmatprep.subr.mxu0 0.0
  %1253 = vmatpush1.msra.mxu0 0.0
  %1254 = vmatprep.subr.mxu0 0.0
  %1255 = vmatpush1.msra.mxu0 0.0
  %1256 = vmatprep.mubr.f32.mxu0 0.0
  %1257 = vmatmul.mubr.f32.gmra.mrb[0].mxu0 %v1048
  %v1258 = vpop.f32.mrb[0].mxu0
  %v1259 = vadd.f32 0.0, %v1258
  %v1260 = vpop.f32.mrb[0].mxu0
  %v1261 = vadd.f32 0.0, %v1260
  %1262 = vdwg.mxu0
  %v1263 = vadd.f32 %v1012, %v1117
  %v1264 = vadd.f32 %v1013, %v1119
  %v1265 = vadd.f32 %v1014, %v1188
  %v1266 = vadd.f32 %v1015, %v1190
  %v1267 = vadd.f32 %v1016, %v1259
  %v1268 = vadd.f32 %v1017, %v1261
  %s1269 = scalar_lea.vmem %s2, 40
  %v1270 = vld [vmem:[%s1269] sm:$0xff]
  %1271 = vrot.lane.b32.xlu0 %v39, 108
  %v1272 = vpop.permute.xlu0 %1271
  %1273 = vrot.lane.b32.xlu0 %v40, 108
  %v1274 = vpop.permute.xlu0 %1273
  %1275 = vrot.lane.b32.xlu0 %v41, 108
  %v1276 = vpop.permute.xlu0 %1275
  %1277 = vrot.lane.b32.xlu0 %v42, 108
  %v1278 = vpop.permute.xlu0 %1277
  %1279 = vrot.lane.b32.xlu0 %v43, 108
  %v1280 = vpop.permute.xlu0 %1279
  %1281 = vrot.lane.b32.xlu0 %v44, 108
  %v1282 = vpop.permute.xlu0 %1281
  %1283 = vrot.lane.b32.xlu0 %v45, 108
  %v1284 = vpop.permute.xlu0 %1283
  %vm1285 = vcmask 883712
  %v1286 = vsel %vm1285, %v1272, %v1274
  %v1287 = vsel %vm1285, %v1274, %v1276
  %v1288 = vsel %vm1285, %v1276, %v1278
  %v1289 = vsel %vm1285, %v1278, %v1280
  %v1290 = vsel %vm1285, %v1280, %v1282
  %v1291 = vsel %vm1285, %v1282, %v1284
  %v1299 = vsel %vm83, %v1270, 0
  %1301 = vmatprep.subr.mxu0 %v1287
  %1302 = vmatpush1.msra.mxu0 %v1286
  %1303 = vmatprep.subr.mxu0 0.0
  %1304 = vmatpush1.msra.mxu0 0.0
  %1305 = vmatprep.subr.mxu0 0.0
  %1306 = vmatpush1.msra.mxu0 0.0
  %1307 = vmatprep.subr.mxu0 0.0
  %1308 = vmatpush1.msra.mxu0 0.0
  %1309 = vmatprep.subr.mxu0 0.0
  %1310 = vmatpush1.msra.mxu0 0.0
  %1311 = vmatprep.subr.mxu0 0.0
  %1312 = vmatpush1.msra.mxu0 0.0
  %1313 = vmatprep.subr.mxu0 0.0
  %1314 = vmatpush1.msra.mxu0 0.0
  %1315 = vmatprep.subr.mxu0 0.0
  %1316 = vmatpush1.msra.mxu0 0.0
  %1317 = vmatprep.subr.mxu0 0.0
  %1318 = vmatpush1.msra.mxu0 0.0
  %1319 = vmatprep.subr.mxu0 0.0
  %1320 = vmatpush1.msra.mxu0 0.0
  %1321 = vmatprep.subr.mxu0 0.0
  %1322 = vmatpush1.msra.mxu0 0.0
  %1323 = vmatprep.subr.mxu0 0.0
  %1324 = vmatpush1.msra.mxu0 0.0
  %1325 = vmatprep.subr.mxu0 0.0
  %1326 = vmatpush1.msra.mxu0 0.0
  %1327 = vmatprep.subr.mxu0 0.0
  %1328 = vmatpush1.msra.mxu0 0.0
  %1329 = vmatprep.subr.mxu0 0.0
  %1330 = vmatpush1.msra.mxu0 0.0
  %1331 = vmatprep.subr.mxu0 0.0
  %1332 = vmatpush1.msra.mxu0 0.0
  %1333 = vmatprep.subr.mxu0 0.0
  %1334 = vmatpush1.msra.mxu0 0.0
  %1335 = vmatprep.subr.mxu0 0.0
  %1336 = vmatpush1.msra.mxu0 0.0
  %1337 = vmatprep.subr.mxu0 0.0
  %1338 = vmatpush1.msra.mxu0 0.0
  %1339 = vmatprep.subr.mxu0 0.0
  %1340 = vmatpush1.msra.mxu0 0.0
  %1341 = vmatprep.subr.mxu0 0.0
  %1342 = vmatpush1.msra.mxu0 0.0
  %1343 = vmatprep.subr.mxu0 0.0
  %1344 = vmatpush1.msra.mxu0 0.0
  %1345 = vmatprep.subr.mxu0 0.0
  %1346 = vmatpush1.msra.mxu0 0.0
  %1347 = vmatprep.subr.mxu0 0.0
  %1348 = vmatpush1.msra.mxu0 0.0
  %1349 = vmatprep.subr.mxu0 0.0
  %1350 = vmatpush1.msra.mxu0 0.0
  %1351 = vmatprep.subr.mxu0 0.0
  %1352 = vmatpush1.msra.mxu0 0.0
  %1353 = vmatprep.subr.mxu0 0.0
  %1354 = vmatpush1.msra.mxu0 0.0
  %1355 = vmatprep.subr.mxu0 0.0
  %1356 = vmatpush1.msra.mxu0 0.0
  %1357 = vmatprep.subr.mxu0 0.0
  %1358 = vmatpush1.msra.mxu0 0.0
  %1359 = vmatprep.subr.mxu0 0.0
  %1360 = vmatpush1.msra.mxu0 0.0
  %1361 = vmatprep.subr.mxu0 0.0
  %1362 = vmatpush1.msra.mxu0 0.0
  %1363 = vmatprep.subr.mxu0 0.0
  %1364 = vmatpush1.msra.mxu0 0.0
  %1365 = vmatprep.mubr.f32.mxu0 0.0
  %1366 = vmatmul.mubr.f32.gmra.mrb[0].mxu0 %v1299
  %v1367 = vpop.f32.mrb[0].mxu0
  %v1368 = vadd.f32 0.0, %v1367
  %v1369 = vpop.f32.mrb[0].mxu0
  %v1370 = vadd.f32 0.0, %v1369
  %1371 = vdwg.mxu0
  %1372 = vmatprep.subr.mxu0 %v1289
  %1373 = vmatpush1.msra.mxu0 %v1288
  %1374 = vmatprep.subr.mxu0 0.0
  %1375 = vmatpush1.msra.mxu0 0.0
  %1376 = vmatprep.subr.mxu0 0.0
  %1377 = vmatpush1.msra.mxu0 0.0
  %1378 = vmatprep.subr.mxu0 0.0
  %1379 = vmatpush1.msra.mxu0 0.0
  %1380 = vmatprep.subr.mxu0 0.0
  %1381 = vmatpush1.msra.mxu0 0.0
  %1382 = vmatprep.subr.mxu0 0.0
  %1383 = vmatpush1.msra.mxu0 0.0
  %1384 = vmatprep.subr.mxu0 0.0
  %1385 = vmatpush1.msra.mxu0 0.0
  %1386 = vmatprep.subr.mxu0 0.0
  %1387 = vmatpush1.msra.mxu0 0.0
  %1388 = vmatprep.subr.mxu0 0.0
  %1389 = vmatpush1.msra.mxu0 0.0
  %1390 = vmatprep.subr.mxu0 0.0
  %1391 = vmatpush1.msra.mxu0 0.0
  %1392 = vmatprep.subr.mxu0 0.0
  %1393 = vmatpush1.msra.mxu0 0.0
  %1394 = vmatprep.subr.mxu0 0.0
  %1395 = vmatpush1.msra.mxu0 0.0
  %1396 = vmatprep.subr.mxu0 0.0
  %1397 = vmatpush1.msra.mxu0 0.0
  %1398 = vmatprep.subr.mxu0 0.0
  %1399 = vmatpush1.msra.mxu0 0.0
  %1400 = vmatprep.subr.mxu0 0.0
  %1401 = vmatpush1.msra.mxu0 0.0
  %1402 = vmatprep.subr.mxu0 0.0
  %1403 = vmatpush1.msra.mxu0 0.0
  %1404 = vmatprep.subr.mxu0 0.0
  %1405 = vmatpush1.msra.mxu0 0.0
  %1406 = vmatprep.subr.mxu0 0.0
  %1407 = vmatpush1.msra.mxu0 0.0
  %1408 = vmatprep.subr.mxu0 0.0
  %1409 = vmatpush1.msra.mxu0 0.0
  %1410 = vmatprep.subr.mxu0 0.0
  %1411 = vmatpush1.msra.mxu0 0.0
  %1412 = vmatprep.subr.mxu0 0.0
  %1413 = vmatpush1.msra.mxu0 0.0
  %1414 = vmatprep.subr.mxu0 0.0
  %1415 = vmatpush1.msra.mxu0 0.0
  %1416 = vmatprep.subr.mxu0 0.0
  %1417 = vmatpush1.msra.mxu0 0.0
  %1418 = vmatprep.subr.mxu0 0.0
  %1419 = vmatpush1.msra.mxu0 0.0
  %1420 = vmatprep.subr.mxu0 0.0
  %1421 = vmatpush1.msra.mxu0 0.0
  %1422 = vmatprep.subr.mxu0 0.0
  %1423 = vmatpush1.msra.mxu0 0.0
  %1424 = vmatprep.subr.mxu0 0.0
  %1425 = vmatpush1.msra.mxu0 0.0
  %1426 = vmatprep.subr.mxu0 0.0
  %1427 = vmatpush1.msra.mxu0 0.0
  %1428 = vmatprep.subr.mxu0 0.0
  %1429 = vmatpush1.msra.mxu0 0.0
  %1430 = vmatprep.subr.mxu0 0.0
  %1431 = vmatpush1.msra.mxu0 0.0
  %1432 = vmatprep.subr.mxu0 0.0
  %1433 = vmatpush1.msra.mxu0 0.0
  %1434 = vmatprep.subr.mxu0 0.0
  %1435 = vmatpush1.msra.mxu0 0.0
  %1436 = vmatprep.mubr.f32.mxu0 0.0
  %1437 = vmatmul.mubr.f32.gmra.mrb[0].mxu0 %v1299
  %v1438 = vpop.f32.mrb[0].mxu0
  %v1439 = vadd.f32 0.0, %v1438
  %v1440 = vpop.f32.mrb[0].mxu0
  %v1441 = vadd.f32 0.0, %v1440
  %1442 = vdwg.mxu0
  %1443 = vmatprep.subr.mxu0 %v1291
  %1444 = vmatpush1.msra.mxu0 %v1290
  %1445 = vmatprep.subr.mxu0 0.0
  %1446 = vmatpush1.msra.mxu0 0.0
  %1447 = vmatprep.subr.mxu0 0.0
  %1448 = vmatpush1.msra.mxu0 0.0
  %1449 = vmatprep.subr.mxu0 0.0
  %1450 = vmatpush1.msra.mxu0 0.0
  %1451 = vmatprep.subr.mxu0 0.0
  %1452 = vmatpush1.msra.mxu0 0.0
  %1453 = vmatprep.subr.mxu0 0.0
  %1454 = vmatpush1.msra.mxu0 0.0
  %1455 = vmatprep.subr.mxu0 0.0
  %1456 = vmatpush1.msra.mxu0 0.0
  %1457 = vmatprep.subr.mxu0 0.0
  %1458 = vmatpush1.msra.mxu0 0.0
  %1459 = vmatprep.subr.mxu0 0.0
  %1460 = vmatpush1.msra.mxu0 0.0
  %1461 = vmatprep.subr.mxu0 0.0
  %1462 = vmatpush1.msra.mxu0 0.0
  %1463 = vmatprep.subr.mxu0 0.0
  %1464 = vmatpush1.msra.mxu0 0.0
  %1465 = vmatprep.subr.mxu0 0.0
  %1466 = vmatpush1.msra.mxu0 0.0
  %1467 = vmatprep.subr.mxu0 0.0
  %1468 = vmatpush1.msra.mxu0 0.0
  %1469 = vmatprep.subr.mxu0 0.0
  %1470 = vmatpush1.msra.mxu0 0.0
  %1471 = vmatprep.subr.mxu0 0.0
  %1472 = vmatpush1.msra.mxu0 0.0
  %1473 = vmatprep.subr.mxu0 0.0
  %1474 = vmatpush1.msra.mxu0 0.0
  %1475 = vmatprep.subr.mxu0 0.0
  %1476 = vmatpush1.msra.mxu0 0.0
  %1477 = vmatprep.subr.mxu0 0.0
  %1478 = vmatpush1.msra.mxu0 0.0
  %1479 = vmatprep.subr.mxu0 0.0
  %1480 = vmatpush1.msra.mxu0 0.0
  %1481 = vmatprep.subr.mxu0 0.0
  %1482 = vmatpush1.msra.mxu0 0.0
  %1483 = vmatprep.subr.mxu0 0.0
  %1484 = vmatpush1.msra.mxu0 0.0
  %1485 = vmatprep.subr.mxu0 0.0
  %1486 = vmatpush1.msra.mxu0 0.0
  %1487 = vmatprep.subr.mxu0 0.0
  %1488 = vmatpush1.msra.mxu0 0.0
  %1489 = vmatprep.subr.mxu0 0.0
  %1490 = vmatpush1.msra.mxu0 0.0
  %1491 = vmatprep.subr.mxu0 0.0
  %1492 = vmatpush1.msra.mxu0 0.0
  %1493 = vmatprep.subr.mxu0 0.0
  %1494 = vmatpush1.msra.mxu0 0.0
  %1495 = vmatprep.subr.mxu0 0.0
  %1496 = vmatpush1.msra.mxu0 0.0
  %1497 = vmatprep.subr.mxu0 0.0
  %1498 = vmatpush1.msra.mxu0 0.0
  %1499 = vmatprep.subr.mxu0 0.0
  %1500 = vmatpush1.msra.mxu0 0.0
  %1501 = vmatprep.subr.mxu0 0.0
  %1502 = vmatpush1.msra.mxu0 0.0
  %1503 = vmatprep.subr.mxu0 0.0
  %1504 = vmatpush1.msra.mxu0 0.0
  %1505 = vmatprep.subr.mxu0 0.0
  %1506 = vmatpush1.msra.mxu0 0.0
  %1507 = vmatprep.mubr.f32.mxu0 0.0
  %1508 = vmatmul.mubr.f32.gmra.mrb[0].mxu0 %v1299
  %v1509 = vpop.f32.mrb[0].mxu0
  %v1510 = vadd.f32 0.0, %v1509
  %v1511 = vpop.f32.mrb[0].mxu0
  %v1512 = vadd.f32 0.0, %v1511
  %1513 = vdwg.mxu0
  %v1514 = vadd.f32 %v1263, %v1368
  %v1515 = vadd.f32 %v1264, %v1370
  %v1516 = vadd.f32 %v1265, %v1439
  %v1517 = vadd.f32 %v1266, %v1441
  %v1518 = vadd.f32 %v1267, %v1510
  %v1519 = vadd.f32 %v1268, %v1512
  %s1520 = scalar_lea.vmem %s2, 48
  %v1521 = vld [vmem:[%s1520] sm:$0xff]
  %1522 = vrot.lane.b32.xlu0 %v39, 92
  %v1523 = vpop.permute.xlu0 %1522
  %1524 = vrot.lane.b32.xlu0 %v40, 92
  %v1525 = vpop.permute.xlu0 %1524
  %1526 = vrot.lane.b32.xlu0 %v41, 92
  %v1527 = vpop.permute.xlu0 %1526
  %1528 = vrot.lane.b32.xlu0 %v42, 92
  %v1529 = vpop.permute.xlu0 %1528
  %1530 = vrot.lane.b32.xlu0 %v43, 92
  %v1531 = vpop.permute.xlu0 %1530
  %1532 = vrot.lane.b32.xlu0 %v44, 92
  %v1533 = vpop.permute.xlu0 %1532
  %1534 = vrot.lane.b32.xlu0 %v45, 92
  %v1535 = vpop.permute.xlu0 %1534
  %vm1536 = vcmask 752640
  %v1537 = vsel %vm1536, %v1523, %v1525
  %v1538 = vsel %vm1536, %v1525, %v1527
  %v1539 = vsel %vm1536, %v1527, %v1529
  %v1540 = vsel %vm1536, %v1529, %v1531
  %v1541 = vsel %vm1536, %v1531, %v1533
  %v1542 = vsel %vm1536, %v1533, %v1535
  %v1550 = vsel %vm83, %v1521, 0
  %1552 = vmatprep.subr.mxu0 %v1538
  %1553 = vmatpush1.msra.mxu0 %v1537
  %1554 = vmatprep.subr.mxu0 0.0
  %1555 = vmatpush1.msra.mxu0 0.0
  %1556 = vmatprep.subr.mxu0 0.0
  %1557 = vmatpush1.msra.mxu0 0.0
  %1558 = vmatprep.subr.mxu0 0.0
  %1559 = vmatpush1.msra.mxu0 0.0
  %1560 = vmatprep.subr.mxu0 0.0
  %1561 = vmatpush1.msra.mxu0 0.0
  %1562 = vmatprep.subr.mxu0 0.0
  %1563 = vmatpush1.msra.mxu0 0.0
  %1564 = vmatprep.subr.mxu0 0.0
  %1565 = vmatpush1.msra.mxu0 0.0
  %1566 = vmatprep.subr.mxu0 0.0
  %1567 = vmatpush1.msra.mxu0 0.0
  %1568 = vmatprep.subr.mxu0 0.0
  %1569 = vmatpush1.msra.mxu0 0.0
  %1570 = vmatprep.subr.mxu0 0.0
  %1571 = vmatpush1.msra.mxu0 0.0
  %1572 = vmatprep.subr.mxu0 0.0
  %1573 = vmatpush1.msra.mxu0 0.0
  %1574 = vmatprep.subr.mxu0 0.0
  %1575 = vmatpush1.msra.mxu0 0.0
  %1576 = vmatprep.subr.mxu0 0.0
  %1577 = vmatpush1.msra.mxu0 0.0
  %1578 = vmatprep.subr.mxu0 0.0
  %1579 = vmatpush1.msra.mxu0 0.0
  %1580 = vmatprep.subr.mxu0 0.0
  %1581 = vmatpush1.msra.mxu0 0.0
  %1582 = vmatprep.subr.mxu0 0.0
  %1583 = vmatpush1.msra.mxu0 0.0
  %1584 = vmatprep.subr.mxu0 0.0
  %1585 = vmatpush1.msra.mxu0 0.0
  %1586 = vmatprep.subr.mxu0 0.0
  %1587 = vmatpush1.msra.mxu0 0.0
  %1588 = vmatprep.subr.mxu0 0.0
  %1589 = vmatpush1.msra.mxu0 0.0
  %1590 = vmatprep.subr.mxu0 0.0
  %1591 = vmatpush1.msra.mxu0 0.0
  %1592 = vmatprep.subr.mxu0 0.0
  %1593 = vmatpush1.msra.mxu0 0.0
  %1594 = vmatprep.subr.mxu0 0.0
  %1595 = vmatpush1.msra.mxu0 0.0
  %1596 = vmatprep.subr.mxu0 0.0
  %1597 = vmatpush1.msra.mxu0 0.0
  %1598 = vmatprep.subr.mxu0 0.0
  %1599 = vmatpush1.msra.mxu0 0.0
  %1600 = vmatprep.subr.mxu0 0.0
  %1601 = vmatpush1.msra.mxu0 0.0
  %1602 = vmatprep.subr.mxu0 0.0
  %1603 = vmatpush1.msra.mxu0 0.0
  %1604 = vmatprep.subr.mxu0 0.0
  %1605 = vmatpush1.msra.mxu0 0.0
  %1606 = vmatprep.subr.mxu0 0.0
  %1607 = vmatpush1.msra.mxu0 0.0
  %1608 = vmatprep.subr.mxu0 0.0
  %1609 = vmatpush1.msra.mxu0 0.0
  %1610 = vmatprep.subr.mxu0 0.0
  %1611 = vmatpush1.msra.mxu0 0.0
  %1612 = vmatprep.subr.mxu0 0.0
  %1613 = vmatpush1.msra.mxu0 0.0
  %1614 = vmatprep.subr.mxu0 0.0
  %1615 = vmatpush1.msra.mxu0 0.0
  %1616 = vmatprep.mubr.f32.mxu0 0.0
  %1617 = vmatmul.mubr.f32.gmra.mrb[0].mxu0 %v1550
  %v1618 = vpop.f32.mrb[0].mxu0
  %v1619 = vadd.f32 0.0, %v1618
  %v1620 = vpop.f32.mrb[0].mxu0
  %v1621 = vadd.f32 0.0, %v1620
  %1622 = vdwg.mxu0
  %1623 = vmatprep.subr.mxu0 %v1540
  %1624 = vmatpush1.msra.mxu0 %v1539
  %1625 = vmatprep.subr.mxu0 0.0
  %1626 = vmatpush1.msra.mxu0 0.0
  %1627 = vmatprep.subr.mxu0 0.0
  %1628 = vmatpush1.msra.mxu0 0.0
  %1629 = vmatprep.subr.mxu0 0.0
  %1630 = vmatpush1.msra.mxu0 0.0
  %1631 = vmatprep.subr.mxu0 0.0
  %1632 = vmatpush1.msra.mxu0 0.0
  %1633 = vmatprep.subr.mxu0 0.0
  %1634 = vmatpush1.msra.mxu0 0.0
  %1635 = vmatprep.subr.mxu0 0.0
  %1636 = vmatpush1.msra.mxu0 0.0
  %1637 = vmatprep.subr.mxu0 0.0
  %1638 = vmatpush1.msra.mxu0 0.0
  %1639 = vmatprep.subr.mxu0 0.0
  %1640 = vmatpush1.msra.mxu0 0.0
  %1641 = vmatprep.subr.mxu0 0.0
  %1642 = vmatpush1.msra.mxu0 0.0
  %1643 = vmatprep.subr.mxu0 0.0
  %1644 = vmatpush1.msra.mxu0 0.0
  %1645 = vmatprep.subr.mxu0 0.0
  %1646 = vmatpush1.msra.mxu0 0.0
  %1647 = vmatprep.subr.mxu0 0.0
  %1648 = vmatpush1.msra.mxu0 0.0
  %1649 = vmatprep.subr.mxu0 0.0
  %1650 = vmatpush1.msra.mxu0 0.0
  %1651 = vmatprep.subr.mxu0 0.0
  %1652 = vmatpush1.msra.mxu0 0.0
  %1653 = vmatprep.subr.mxu0 0.0
  %1654 = vmatpush1.msra.mxu0 0.0
  %1655 = vmatprep.subr.mxu0 0.0
  %1656 = vmatpush1.msra.mxu0 0.0
  %1657 = vmatprep.subr.mxu0 0.0
  %1658 = vmatpush1.msra.mxu0 0.0
  %1659 = vmatprep.subr.mxu0 0.0
  %1660 = vmatpush1.msra.mxu0 0.0
  %1661 = vmatprep.subr.mxu0 0.0
  %1662 = vmatpush1.msra.mxu0 0.0
  %1663 = vmatprep.subr.mxu0 0.0
  %1664 = vmatpush1.msra.mxu0 0.0
  %1665 = vmatprep.subr.mxu0 0.0
  %1666 = vmatpush1.msra.mxu0 0.0
  %1667 = vmatprep.subr.mxu0 0.0
  %1668 = vmatpush1.msra.mxu0 0.0
  %1669 = vmatprep.subr.mxu0 0.0
  %1670 = vmatpush1.msra.mxu0 0.0
  %1671 = vmatprep.subr.mxu0 0.0
  %1672 = vmatpush1.msra.mxu0 0.0
  %1673 = vmatprep.subr.mxu0 0.0
  %1674 = vmatpush1.msra.mxu0 0.0
  %1675 = vmatprep.subr.mxu0 0.0
  %1676 = vmatpush1.msra.mxu0 0.0
  %1677 = vmatprep.subr.mxu0 0.0
  %1678 = vmatpush1.msra.mxu0 0.0
  %1679 = vmatprep.subr.mxu0 0.0
  %1680 = vmatpush1.msra.mxu0 0.0
  %1681 = vmatprep.subr.mxu0 0.0
  %1682 = vmatpush1.msra.mxu0 0.0
  %1683 = vmatprep.subr.mxu0 0.0
  %1684 = vmatpush1.msra.mxu0 0.0
  %1685 = vmatprep.subr.mxu0 0.0
  %1686 = vmatpush1.msra.mxu0 0.0
  %1687 = vmatprep.mubr.f32.mxu0 0.0
  %1688 = vmatmul.mubr.f32.gmra.mrb[0].mxu0 %v1550
  %v1689 = vpop.f32.mrb[0].mxu0
  %v1690 = vadd.f32 0.0, %v1689
  %v1691 = vpop.f32.mrb[0].mxu0
  %v1692 = vadd.f32 0.0, %v1691
  %1693 = vdwg.mxu0
  %1694 = vmatprep.subr.mxu0 %v1542
  %1695 = vmatpush1.msra.mxu0 %v1541
  %1696 = vmatprep.subr.mxu0 0.0
  %1697 = vmatpush1.msra.mxu0 0.0
  %1698 = vmatprep.subr.mxu0 0.0
  %1699 = vmatpush1.msra.mxu0 0.0
  %1700 = vmatprep.subr.mxu0 0.0
  %1701 = vmatpush1.msra.mxu0 0.0
  %1702 = vmatprep.subr.mxu0 0.0
  %1703 = vmatpush1.msra.mxu0 0.0
  %1704 = vmatprep.subr.mxu0 0.0
  %1705 = vmatpush1.msra.mxu0 0.0
  %1706 = vmatprep.subr.mxu0 0.0
  %1707 = vmatpush1.msra.mxu0 0.0
  %1708 = vmatprep.subr.mxu0 0.0
  %1709 = vmatpush1.msra.mxu0 0.0
  %1710 = vmatprep.subr.mxu0 0.0
  %1711 = vmatpush1.msra.mxu0 0.0
  %1712 = vmatprep.subr.mxu0 0.0
  %1713 = vmatpush1.msra.mxu0 0.0
  %1714 = vmatprep.subr.mxu0 0.0
  %1715 = vmatpush1.msra.mxu0 0.0
  %1716 = vmatprep.subr.mxu0 0.0
  %1717 = vmatpush1.msra.mxu0 0.0
  %1718 = vmatprep.subr.mxu0 0.0
  %1719 = vmatpush1.msra.mxu0 0.0
  %1720 = vmatprep.subr.mxu0 0.0
  %1721 = vmatpush1.msra.mxu0 0.0
  %1722 = vmatprep.subr.mxu0 0.0
  %1723 = vmatpush1.msra.mxu0 0.0
  %1724 = vmatprep.subr.mxu0 0.0
  %1725 = vmatpush1.msra.mxu0 0.0
  %1726 = vmatprep.subr.mxu0 0.0
  %1727 = vmatpush1.msra.mxu0 0.0
  %1728 = vmatprep.subr.mxu0 0.0
  %1729 = vmatpush1.msra.mxu0 0.0
  %1730 = vmatprep.subr.mxu0 0.0
  %1731 = vmatpush1.msra.mxu0 0.0
  %1732 = vmatprep.subr.mxu0 0.0
  %1733 = vmatpush1.msra.mxu0 0.0
  %1734 = vmatprep.subr.mxu0 0.0
  %1735 = vmatpush1.msra.mxu0 0.0
  %1736 = vmatprep.subr.mxu0 0.0
  %1737 = vmatpush1.msra.mxu0 0.0
  %1738 = vmatprep.subr.mxu0 0.0
  %1739 = vmatpush1.msra.mxu0 0.0
  %1740 = vmatprep.subr.mxu0 0.0
  %1741 = vmatpush1.msra.mxu0 0.0
  %1742 = vmatprep.subr.mxu0 0.0
  %1743 = vmatpush1.msra.mxu0 0.0
  %1744 = vmatprep.subr.mxu0 0.0
  %1745 = vmatpush1.msra.mxu0 0.0
  %1746 = vmatprep.subr.mxu0 0.0
  %1747 = vmatpush1.msra.mxu0 0.0
  %1748 = vmatprep.subr.mxu0 0.0
  %1749 = vmatpush1.msra.mxu0 0.0
  %1750 = vmatprep.subr.mxu0 0.0
  %1751 = vmatpush1.msra.mxu0 0.0
  %1752 = vmatprep.subr.mxu0 0.0
  %1753 = vmatpush1.msra.mxu0 0.0
  %1754 = vmatprep.subr.mxu0 0.0
  %1755 = vmatpush1.msra.mxu0 0.0
  %1756 = vmatprep.subr.mxu0 0.0
  %1757 = vmatpush1.msra.mxu0 0.0
  %1758 = vmatprep.mubr.f32.mxu0 0.0
  %1759 = vmatmul.mubr.f32.gmra.mrb[0].mxu0 %v1550
  %v1760 = vpop.f32.mrb[0].mxu0
  %v1761 = vadd.f32 0.0, %v1760
  %v1762 = vpop.f32.mrb[0].mxu0
  %v1763 = vadd.f32 0.0, %v1762
  %1764 = vdwg.mxu0
  %v1765 = vadd.f32 %v1514, %v1619
  %v1766 = vadd.f32 %v1515, %v1621
  %v1767 = vadd.f32 %v1516, %v1690
  %v1768 = vadd.f32 %v1517, %v1692
  %v1769 = vadd.f32 %v1518, %v1761
  %v1770 = vadd.f32 %v1519, %v1763
  %s1771 = scalar_lea.vmem %s2, 56
  %v1772 = vld [vmem:[%s1771] sm:$0xff]
  %1773 = vrot.lane.b32.xlu0 %v39, 91
  %v1774 = vpop.permute.xlu0 %1773
  %1775 = vrot.lane.b32.xlu0 %v40, 91
  %v1776 = vpop.permute.xlu0 %1775
  %1777 = vrot.lane.b32.xlu0 %v41, 91
  %v1778 = vpop.permute.xlu0 %1777
  %1779 = vrot.lane.b32.xlu0 %v42, 91
  %v1780 = vpop.permute.xlu0 %1779
  %1781 = vrot.lane.b32.xlu0 %v43, 91
  %v1782 = vpop.permute.xlu0 %1781
  %1783 = vrot.lane.b32.xlu0 %v44, 91
  %v1784 = vpop.permute.xlu0 %1783
  %1785 = vrot.lane.b32.xlu0 %v45, 91
  %v1786 = vpop.permute.xlu0 %1785
  %vm1787 = vcmask 744448
  %v1788 = vsel %vm1787, %v1774, %v1776
  %v1789 = vsel %vm1787, %v1776, %v1778
  %v1790 = vsel %vm1787, %v1778, %v1780
  %v1791 = vsel %vm1787, %v1780, %v1782
  %v1792 = vsel %vm1787, %v1782, %v1784
  %v1793 = vsel %vm1787, %v1784, %v1786
  %v1801 = vsel %vm83, %v1772, 0
  %1803 = vmatprep.subr.mxu0 %v1789
  %1804 = vmatpush1.msra.mxu0 %v1788
  %1805 = vmatprep.subr.mxu0 0.0
  %1806 = vmatpush1.msra.mxu0 0.0
  %1807 = vmatprep.subr.mxu0 0.0
  %1808 = vmatpush1.msra.mxu0 0.0
  %1809 = vmatprep.subr.mxu0 0.0
  %1810 = vmatpush1.msra.mxu0 0.0
  %1811 = vmatprep.subr.mxu0 0.0
  %1812 = vmatpush1.msra.mxu0 0.0
  %1813 = vmatprep.subr.mxu0 0.0
  %1814 = vmatpush1.msra.mxu0 0.0
  %1815 = vmatprep.subr.mxu0 0.0
  %1816 = vmatpush1.msra.mxu0 0.0
  %1817 = vmatprep.subr.mxu0 0.0
  %1818 = vmatpush1.msra.mxu0 0.0
  %1819 = vmatprep.subr.mxu0 0.0
  %1820 = vmatpush1.msra.mxu0 0.0
  %1821 = vmatprep.subr.mxu0 0.0
  %1822 = vmatpush1.msra.mxu0 0.0
  %1823 = vmatprep.subr.mxu0 0.0
  %1824 = vmatpush1.msra.mxu0 0.0
  %1825 = vmatprep.subr.mxu0 0.0
  %1826 = vmatpush1.msra.mxu0 0.0
  %1827 = vmatprep.subr.mxu0 0.0
  %1828 = vmatpush1.msra.mxu0 0.0
  %1829 = vmatprep.subr.mxu0 0.0
  %1830 = vmatpush1.msra.mxu0 0.0
  %1831 = vmatprep.subr.mxu0 0.0
  %1832 = vmatpush1.msra.mxu0 0.0
  %1833 = vmatprep.subr.mxu0 0.0
  %1834 = vmatpush1.msra.mxu0 0.0
  %1835 = vmatprep.subr.mxu0 0.0
  %1836 = vmatpush1.msra.mxu0 0.0
  %1837 = vmatprep.subr.mxu0 0.0
  %1838 = vmatpush1.msra.mxu0 0.0
  %1839 = vmatprep.subr.mxu0 0.0
  %1840 = vmatpush1.msra.mxu0 0.0
  %1841 = vmatprep.subr.mxu0 0.0
  %1842 = vmatpush1.msra.mxu0 0.0
  %1843 = vmatprep.subr.mxu0 0.0
  %1844 = vmatpush1.msra.mxu0 0.0
  %1845 = vmatprep.subr.mxu0 0.0
  %1846 = vmatpush1.msra.mxu0 0.0
  %1847 = vmatprep.subr.mxu0 0.0
  %1848 = vmatpush1.msra.mxu0 0.0
  %1849 = vmatprep.subr.mxu0 0.0
  %1850 = vmatpush1.msra.mxu0 0.0
  %1851 = vmatprep.subr.mxu0 0.0
  %1852 = vmatpush1.msra.mxu0 0.0
  %1853 = vmatprep.subr.mxu0 0.0
  %1854 = vmatpush1.msra.mxu0 0.0
  %1855 = vmatprep.subr.mxu0 0.0
  %1856 = vmatpush1.msra.mxu0 0.0
  %1857 = vmatprep.subr.mxu0 0.0
  %1858 = vmatpush1.msra.mxu0 0.0
  %1859 = vmatprep.subr.mxu0 0.0
  %1860 = vmatpush1.msra.mxu0 0.0
  %1861 = vmatprep.subr.mxu0 0.0
  %1862 = vmatpush1.msra.mxu0 0.0
  %1863 = vmatprep.subr.mxu0 0.0
  %1864 = vmatpush1.msra.mxu0 0.0
  %1865 = vmatprep.subr.mxu0 0.0
  %1866 = vmatpush1.msra.mxu0 0.0
  %1867 = vmatprep.mubr.f32.mxu0 0.0
  %1868 = vmatmul.mubr.f32.gmra.mrb[0].mxu0 %v1801
  %v1869 = vpop.f32.mrb[0].mxu0
  %v1870 = vadd.f32 0.0, %v1869
  %v1871 = vpop.f32.mrb[0].mxu0
  %v1872 = vadd.f32 0.0, %v1871
  %1873 = vdwg.mxu0
  %1874 = vmatprep.subr.mxu0 %v1791
  %1875 = vmatpush1.msra.mxu0 %v1790
  %1876 = vmatprep.subr.mxu0 0.0
  %1877 = vmatpush1.msra.mxu0 0.0
  %1878 = vmatprep.subr.mxu0 0.0
  %1879 = vmatpush1.msra.mxu0 0.0
  %1880 = vmatprep.subr.mxu0 0.0
  %1881 = vmatpush1.msra.mxu0 0.0
  %1882 = vmatprep.subr.mxu0 0.0
  %1883 = vmatpush1.msra.mxu0 0.0
  %1884 = vmatprep.subr.mxu0 0.0
  %1885 = vmatpush1.msra.mxu0 0.0
  %1886 = vmatprep.subr.mxu0 0.0
  %1887 = vmatpush1.msra.mxu0 0.0
  %1888 = vmatprep.subr.mxu0 0.0
  %1889 = vmatpush1.msra.mxu0 0.0
  %1890 = vmatprep.subr.mxu0 0.0
  %1891 = vmatpush1.msra.mxu0 0.0
  %1892 = vmatprep.subr.mxu0 0.0
  %1893 = vmatpush1.msra.mxu0 0.0
  %1894 = vmatprep.subr.mxu0 0.0
  %1895 = vmatpush1.msra.mxu0 0.0
  %1896 = vmatprep.subr.mxu0 0.0
  %1897 = vmatpush1.msra.mxu0 0.0
  %1898 = vmatprep.subr.mxu0 0.0
  %1899 = vmatpush1.msra.mxu0 0.0
  %1900 = vmatprep.subr.mxu0 0.0
  %1901 = vmatpush1.msra.mxu0 0.0
  %1902 = vmatprep.subr.mxu0 0.0
  %1903 = vmatpush1.msra.mxu0 0.0
  %1904 = vmatprep.subr.mxu0 0.0
  %1905 = vmatpush1.msra.mxu0 0.0
  %1906 = vmatprep.subr.mxu0 0.0
  %1907 = vmatpush1.msra.mxu0 0.0
  %1908 = vmatprep.subr.mxu0 0.0
  %1909 = vmatpush1.msra.mxu0 0.0
  %1910 = vmatprep.subr.mxu0 0.0
  %1911 = vmatpush1.msra.mxu0 0.0
  %1912 = vmatprep.subr.mxu0 0.0
  %1913 = vmatpush1.msra.mxu0 0.0
  %1914 = vmatprep.subr.mxu0 0.0
  %1915 = vmatpush1.msra.mxu0 0.0
  %1916 = vmatprep.subr.mxu0 0.0
  %1917 = vmatpush1.msra.mxu0 0.0
  %1918 = vmatprep.subr.mxu0 0.0
  %1919 = vmatpush1.msra.mxu0 0.0
  %1920 = vmatprep.subr.mxu0 0.0
  %1921 = vmatpush1.msra.mxu0 0.0
  %1922 = vmatprep.subr.mxu0 0.0
  %1923 = vmatpush1.msra.mxu0 0.0
  %1924 = vmatprep.subr.mxu0 0.0
  %1925 = vmatpush1.msra.mxu0 0.0
  %1926 = vmatprep.subr.mxu0 0.0
  %1927 = vmatpush1.msra.mxu0 0.0
  %1928 = vmatprep.subr.mxu0 0.0
  %1929 = vmatpush1.msra.mxu0 0.0
  %1930 = vmatprep.subr.mxu0 0.0
  %1931 = vmatpush1.msra.mxu0 0.0
  %1932 = vmatprep.subr.mxu0 0.0
  %1933 = vmatpush1.msra.mxu0 0.0
  %1934 = vmatprep.subr.mxu0 0.0
  %1935 = vmatpush1.msra.mxu0 0.0
  %1936 = vmatprep.subr.mxu0 0.0
  %1937 = vmatpush1.msra.mxu0 0.0
  %1938 = vmatprep.mubr.f32.mxu0 0.0
  %1939 = vmatmul.mubr.f32.gmra.mrb[0].mxu0 %v1801
  %v1940 = vpop.f32.mrb[0].mxu0
  %v1941 = vadd.f32 0.0, %v1940
  %v1942 = vpop.f32.mrb[0].mxu0
  %v1943 = vadd.f32 0.0, %v1942
  %1944 = vdwg.mxu0
  %1945 = vmatprep.subr.mxu0 %v1793
  %1946 = vmatpush1.msra.mxu0 %v1792
  %1947 = vmatprep.subr.mxu0 0.0
  %1948 = vmatpush1.msra.mxu0 0.0
  %1949 = vmatprep.subr.mxu0 0.0
  %1950 = vmatpush1.msra.mxu0 0.0
  %1951 = vmatprep.subr.mxu0 0.0
  %1952 = vmatpush1.msra.mxu0 0.0
  %1953 = vmatprep.subr.mxu0 0.0
  %1954 = vmatpush1.msra.mxu0 0.0
  %1955 = vmatprep.subr.mxu0 0.0
  %1956 = vmatpush1.msra.mxu0 0.0
  %1957 = vmatprep.subr.mxu0 0.0
  %1958 = vmatpush1.msra.mxu0 0.0
  %1959 = vmatprep.subr.mxu0 0.0
  %1960 = vmatpush1.msra.mxu0 0.0
  %1961 = vmatprep.subr.mxu0 0.0
  %1962 = vmatpush1.msra.mxu0 0.0
  %1963 = vmatprep.subr.mxu0 0.0
  %1964 = vmatpush1.msra.mxu0 0.0
  %1965 = vmatprep.subr.mxu0 0.0
  %1966 = vmatpush1.msra.mxu0 0.0
  %1967 = vmatprep.subr.mxu0 0.0
  %1968 = vmatpush1.msra.mxu0 0.0
  %1969 = vmatprep.subr.mxu0 0.0
  %1970 = vmatpush1.msra.mxu0 0.0
  %1971 = vmatprep.subr.mxu0 0.0
  %1972 = vmatpush1.msra.mxu0 0.0
  %1973 = vmatprep.subr.mxu0 0.0
  %1974 = vmatpush1.msra.mxu0 0.0
  %1975 = vmatprep.subr.mxu0 0.0
  %1976 = vmatpush1.msra.mxu0 0.0
  %1977 = vmatprep.subr.mxu0 0.0
  %1978 = vmatpush1.msra.mxu0 0.0
  %1979 = vmatprep.subr.mxu0 0.0
  %1980 = vmatpush1.msra.mxu0 0.0
  %1981 = vmatprep.subr.mxu0 0.0
  %1982 = vmatpush1.msra.mxu0 0.0
  %1983 = vmatprep.subr.mxu0 0.0
  %1984 = vmatpush1.msra.mxu0 0.0
  %1985 = vmatprep.subr.mxu0 0.0
  %1986 = vmatpush1.msra.mxu0 0.0
  %1987 = vmatprep.subr.mxu0 0.0
  %1988 = vmatpush1.msra.mxu0 0.0
  %1989 = vmatprep.subr.mxu0 0.0
  %1990 = vmatpush1.msra.mxu0 0.0
  %1991 = vmatprep.subr.mxu0 0.0
  %1992 = vmatpush1.msra.mxu0 0.0
  %1993 = vmatprep.subr.mxu0 0.0
  %1994 = vmatpush1.msra.mxu0 0.0
  %1995 = vmatprep.subr.mxu0 0.0
  %1996 = vmatpush1.msra.mxu0 0.0
  %1997 = vmatprep.subr.mxu0 0.0
  %1998 = vmatpush1.msra.mxu0 0.0
  %1999 = vmatprep.subr.mxu0 0.0
  %2000 = vmatpush1.msra.mxu0 0.0
  %2001 = vmatprep.subr.mxu0 0.0
  %2002 = vmatpush1.msra.mxu0 0.0
  %2003 = vmatprep.subr.mxu0 0.0
  %2004 = vmatpush1.msra.mxu0 0.0
  %2005 = vmatprep.subr.mxu0 0.0
  %2006 = vmatpush1.msra.mxu0 0.0
  %2007 = vmatprep.subr.mxu0 0.0
  %2008 = vmatpush1.msra.mxu0 0.0
  %2009 = vmatprep.mubr.f32.mxu0 0.0
  %2010 = vmatmul.mubr.f32.gmra.mrb[0].mxu0 %v1801
  %v2011 = vpop.f32.mrb[0].mxu0
  %v2012 = vadd.f32 0.0, %v2011
  %v2013 = vpop.f32.mrb[0].mxu0
  %v2014 = vadd.f32 0.0, %v2013
  %2015 = vdwg.mxu0
  %v2016 = vadd.f32 %v1765, %v1870
  %v2017 = vadd.f32 %v1766, %v1872
  %v2018 = vadd.f32 %v1767, %v1941
  %v2019 = vadd.f32 %v1768, %v1943
  %v2020 = vadd.f32 %v1769, %v2012
  %v2021 = vadd.f32 %v1770, %v2014
  %s2022 = scalar_lea.vmem %s2, 64
  %v2023 = vld [vmem:[%s2022] sm:$0xff]
  %2024 = vrot.lane.b32.xlu0 %v39, 90
  %v2025 = vpop.permute.xlu0 %2024
  %2026 = vrot.lane.b32.xlu0 %v40, 90
  %v2027 = vpop.permute.xlu0 %2026
  %2028 = vrot.lane.b32.xlu0 %v41, 90
  %v2029 = vpop.permute.xlu0 %2028
  %2030 = vrot.lane.b32.xlu0 %v42, 90
  %v2031 = vpop.permute.xlu0 %2030
  %2032 = vrot.lane.b32.xlu0 %v43, 90
  %v2033 = vpop.permute.xlu0 %2032
  %2034 = vrot.lane.b32.xlu0 %v44, 90
  %v2035 = vpop.permute.xlu0 %2034
  %2036 = vrot.lane.b32.xlu0 %v45, 90
  %v2037 = vpop.permute.xlu0 %2036
  %vm2038 = vcmask 736256
  %v2039 = vsel %vm2038, %v2025, %v2027
  %v2040 = vsel %vm2038, %v2027, %v2029
  %v2041 = vsel %vm2038, %v2029, %v2031
  %v2042 = vsel %vm2038, %v2031, %v2033
  %v2043 = vsel %vm2038, %v2033, %v2035
  %v2044 = vsel %vm2038, %v2035, %v2037
  %v2052 = vsel %vm83, %v2023, 0
  %2054 = vmatprep.subr.mxu0 %v2040
  %2055 = vmatpush1.msra.mxu0 %v2039
  %2056 = vmatprep.subr.mxu0 0.0
  %2057 = vmatpush1.msra.mxu0 0.0
  %2058 = vmatprep.subr.mxu0 0.0
  %2059 = vmatpush1.msra.mxu0 0.0
  %2060 = vmatprep.subr.mxu0 0.0
  %2061 = vmatpush1.msra.mxu0 0.0
  %2062 = vmatprep.subr.mxu0 0.0
  %2063 = vmatpush1.msra.mxu0 0.0
  %2064 = vmatprep.subr.mxu0 0.0
  %2065 = vmatpush1.msra.mxu0 0.0
  %2066 = vmatprep.subr.mxu0 0.0
  %2067 = vmatpush1.msra.mxu0 0.0
  %2068 = vmatprep.subr.mxu0 0.0
  %2069 = vmatpush1.msra.mxu0 0.0
  %2070 = vmatprep.subr.mxu0 0.0
  %2071 = vmatpush1.msra.mxu0 0.0
  %2072 = vmatprep.subr.mxu0 0.0
  %2073 = vmatpush1.msra.mxu0 0.0
  %2074 = vmatprep.subr.mxu0 0.0
  %2075 = vmatpush1.msra.mxu0 0.0
  %2076 = vmatprep.subr.mxu0 0.0
  %2077 = vmatpush1.msra.mxu0 0.0
  %2078 = vmatprep.subr.mxu0 0.0
  %2079 = vmatpush1.msra.mxu0 0.0
  %2080 = vmatprep.subr.mxu0 0.0
  %2081 = vmatpush1.msra.mxu0 0.0
  %2082 = vmatprep.subr.mxu0 0.0
  %2083 = vmatpush1.msra.mxu0 0.0
  %2084 = vmatprep.subr.mxu0 0.0
  %2085 = vmatpush1.msra.mxu0 0.0
  %2086 = vmatprep.subr.mxu0 0.0
  %2087 = vmatpush1.msra.mxu0 0.0
  %2088 = vmatprep.subr.mxu0 0.0
  %2089 = vmatpush1.msra.mxu0 0.0
  %2090 = vmatprep.subr.mxu0 0.0
  %2091 = vmatpush1.msra.mxu0 0.0
  %2092 = vmatprep.subr.mxu0 0.0
  %2093 = vmatpush1.msra.mxu0 0.0
  %2094 = vmatprep.subr.mxu0 0.0
  %2095 = vmatpush1.msra.mxu0 0.0
  %2096 = vmatprep.subr.mxu0 0.0
  %2097 = vmatpush1.msra.mxu0 0.0
  %2098 = vmatprep.subr.mxu0 0.0
  %2099 = vmatpush1.msra.mxu0 0.0
  %2100 = vmatprep.subr.mxu0 0.0
  %2101 = vmatpush1.msra.mxu0 0.0
  %2102 = vmatprep.subr.mxu0 0.0
  %2103 = vmatpush1.msra.mxu0 0.0
  %2104 = vmatprep.subr.mxu0 0.0
  %2105 = vmatpush1.msra.mxu0 0.0
  %2106 = vmatprep.subr.mxu0 0.0
  %2107 = vmatpush1.msra.mxu0 0.0
  %2108 = vmatprep.subr.mxu0 0.0
  %2109 = vmatpush1.msra.mxu0 0.0
  %2110 = vmatprep.subr.mxu0 0.0
  %2111 = vmatpush1.msra.mxu0 0.0
  %2112 = vmatprep.subr.mxu0 0.0
  %2113 = vmatpush1.msra.mxu0 0.0
  %2114 = vmatprep.subr.mxu0 0.0
  %2115 = vmatpush1.msra.mxu0 0.0
  %2116 = vmatprep.subr.mxu0 0.0
  %2117 = vmatpush1.msra.mxu0 0.0
  %2118 = vmatprep.mubr.f32.mxu0 0.0
  %2119 = vmatmul.mubr.f32.gmra.mrb[0].mxu0 %v2052
  %v2120 = vpop.f32.mrb[0].mxu0
  %v2121 = vadd.f32 0.0, %v2120
  %v2122 = vpop.f32.mrb[0].mxu0
  %v2123 = vadd.f32 0.0, %v2122
  %2124 = vdwg.mxu0
  %2125 = vmatprep.subr.mxu0 %v2042
  %2126 = vmatpush1.msra.mxu0 %v2041
  %2127 = vmatprep.subr.mxu0 0.0
  %2128 = vmatpush1.msra.mxu0 0.0
  %2129 = vmatprep.subr.mxu0 0.0
  %2130 = vmatpush1.msra.mxu0 0.0
  %2131 = vmatprep.subr.mxu0 0.0
  %2132 = vmatpush1.msra.mxu0 0.0
  %2133 = vmatprep.subr.mxu0 0.0
  %2134 = vmatpush1.msra.mxu0 0.0
  %2135 = vmatprep.subr.mxu0 0.0
  %2136 = vmatpush1.msra.mxu0 0.0
  %2137 = vmatprep.subr.mxu0 0.0
  %2138 = vmatpush1.msra.mxu0 0.0
  %2139 = vmatprep.subr.mxu0 0.0
  %2140 = vmatpush1.msra.mxu0 0.0
  %2141 = vmatprep.subr.mxu0 0.0
  %2142 = vmatpush1.msra.mxu0 0.0
  %2143 = vmatprep.subr.mxu0 0.0
  %2144 = vmatpush1.msra.mxu0 0.0
  %2145 = vmatprep.subr.mxu0 0.0
  %2146 = vmatpush1.msra.mxu0 0.0
  %2147 = vmatprep.subr.mxu0 0.0
  %2148 = vmatpush1.msra.mxu0 0.0
  %2149 = vmatprep.subr.mxu0 0.0
  %2150 = vmatpush1.msra.mxu0 0.0
  %2151 = vmatprep.subr.mxu0 0.0
  %2152 = vmatpush1.msra.mxu0 0.0
  %2153 = vmatprep.subr.mxu0 0.0
  %2154 = vmatpush1.msra.mxu0 0.0
  %2155 = vmatprep.subr.mxu0 0.0
  %2156 = vmatpush1.msra.mxu0 0.0
  %2157 = vmatprep.subr.mxu0 0.0
  %2158 = vmatpush1.msra.mxu0 0.0
  %2159 = vmatprep.subr.mxu0 0.0
  %2160 = vmatpush1.msra.mxu0 0.0
  %2161 = vmatprep.subr.mxu0 0.0
  %2162 = vmatpush1.msra.mxu0 0.0
  %2163 = vmatprep.subr.mxu0 0.0
  %2164 = vmatpush1.msra.mxu0 0.0
  %2165 = vmatprep.subr.mxu0 0.0
  %2166 = vmatpush1.msra.mxu0 0.0
  %2167 = vmatprep.subr.mxu0 0.0
  %2168 = vmatpush1.msra.mxu0 0.0
  %2169 = vmatprep.subr.mxu0 0.0
  %2170 = vmatpush1.msra.mxu0 0.0
  %2171 = vmatprep.subr.mxu0 0.0
  %2172 = vmatpush1.msra.mxu0 0.0
  %2173 = vmatprep.subr.mxu0 0.0
  %2174 = vmatpush1.msra.mxu0 0.0
  %2175 = vmatprep.subr.mxu0 0.0
  %2176 = vmatpush1.msra.mxu0 0.0
  %2177 = vmatprep.subr.mxu0 0.0
  %2178 = vmatpush1.msra.mxu0 0.0
  %2179 = vmatprep.subr.mxu0 0.0
  %2180 = vmatpush1.msra.mxu0 0.0
  %2181 = vmatprep.subr.mxu0 0.0
  %2182 = vmatpush1.msra.mxu0 0.0
  %2183 = vmatprep.subr.mxu0 0.0
  %2184 = vmatpush1.msra.mxu0 0.0
  %2185 = vmatprep.subr.mxu0 0.0
  %2186 = vmatpush1.msra.mxu0 0.0
  %2187 = vmatprep.subr.mxu0 0.0
  %2188 = vmatpush1.msra.mxu0 0.0
  %2189 = vmatprep.mubr.f32.mxu0 0.0
  %2190 = vmatmul.mubr.f32.gmra.mrb[0].mxu0 %v2052
  %v2191 = vpop.f32.mrb[0].mxu0
  %v2192 = vadd.f32 0.0, %v2191
  %v2193 = vpop.f32.mrb[0].mxu0
  %v2194 = vadd.f32 0.0, %v2193
  %2195 = vdwg.mxu0
  %2196 = vmatprep.subr.mxu0 %v2044
  %2197 = vmatpush1.msra.mxu0 %v2043
  %2198 = vmatprep.subr.mxu0 0.0
  %2199 = vmatpush1.msra.mxu0 0.0
  %2200 = vmatprep.subr.mxu0 0.0
  %2201 = vmatpush1.msra.mxu0 0.0
  %2202 = vmatprep.subr.mxu0 0.0
  %2203 = vmatpush1.msra.mxu0 0.0
  %2204 = vmatprep.subr.mxu0 0.0
  %2205 = vmatpush1.msra.mxu0 0.0
  %2206 = vmatprep.subr.mxu0 0.0
  %2207 = vmatpush1.msra.mxu0 0.0
  %2208 = vmatprep.subr.mxu0 0.0
  %2209 = vmatpush1.msra.mxu0 0.0
  %2210 = vmatprep.subr.mxu0 0.0
  %2211 = vmatpush1.msra.mxu0 0.0
  %2212 = vmatprep.subr.mxu0 0.0
  %2213 = vmatpush1.msra.mxu0 0.0
  %2214 = vmatprep.subr.mxu0 0.0
  %2215 = vmatpush1.msra.mxu0 0.0
  %2216 = vmatprep.subr.mxu0 0.0
  %2217 = vmatpush1.msra.mxu0 0.0
  %2218 = vmatprep.subr.mxu0 0.0
  %2219 = vmatpush1.msra.mxu0 0.0
  %2220 = vmatprep.subr.mxu0 0.0
  %2221 = vmatpush1.msra.mxu0 0.0
  %2222 = vmatprep.subr.mxu0 0.0
  %2223 = vmatpush1.msra.mxu0 0.0
  %2224 = vmatprep.subr.mxu0 0.0
  %2225 = vmatpush1.msra.mxu0 0.0
  %2226 = vmatprep.subr.mxu0 0.0
  %2227 = vmatpush1.msra.mxu0 0.0
  %2228 = vmatprep.subr.mxu0 0.0
  %2229 = vmatpush1.msra.mxu0 0.0
  %2230 = vmatprep.subr.mxu0 0.0
  %2231 = vmatpush1.msra.mxu0 0.0
  %2232 = vmatprep.subr.mxu0 0.0
  %2233 = vmatpush1.msra.mxu0 0.0
  %2234 = vmatprep.subr.mxu0 0.0
  %2235 = vmatpush1.msra.mxu0 0.0
  %2236 = vmatprep.subr.mxu0 0.0
  %2237 = vmatpush1.msra.mxu0 0.0
  %2238 = vmatprep.subr.mxu0 0.0
  %2239 = vmatpush1.msra.mxu0 0.0
  %2240 = vmatprep.subr.mxu0 0.0
  %2241 = vmatpush1.msra.mxu0 0.0
  %2242 = vmatprep.subr.mxu0 0.0
  %2243 = vmatpush1.msra.mxu0 0.0
  %2244 = vmatprep.subr.mxu0 0.0
  %2245 = vmatpush1.msra.mxu0 0.0
  %2246 = vmatprep.subr.mxu0 0.0
  %2247 = vmatpush1.msra.mxu0 0.0
  %2248 = vmatprep.subr.mxu0 0.0
  %2249 = vmatpush1.msra.mxu0 0.0
  %2250 = vmatprep.subr.mxu0 0.0
  %2251 = vmatpush1.msra.mxu0 0.0
  %2252 = vmatprep.subr.mxu0 0.0
  %2253 = vmatpush1.msra.mxu0 0.0
  %2254 = vmatprep.subr.mxu0 0.0
  %2255 = vmatpush1.msra.mxu0 0.0
  %2256 = vmatprep.subr.mxu0 0.0
  %2257 = vmatpush1.msra.mxu0 0.0
  %2258 = vmatprep.subr.mxu0 0.0
  %2259 = vmatpush1.msra.mxu0 0.0
  %2260 = vmatprep.mubr.f32.mxu0 0.0
  %2261 = vmatmul.mubr.f32.gmra.mrb[0].mxu0 %v2052
  %v2262 = vpop.f32.mrb[0].mxu0
  %v2263 = vadd.f32 0.0, %v2262
  %v2264 = vpop.f32.mrb[0].mxu0
  %v2265 = vadd.f32 0.0, %v2264
  %2266 = vdwg.mxu0
  %v2267 = vadd.f32 %v2016, %v2121
  %v2268 = vadd.f32 %v2017, %v2123
  %v2269 = vadd.f32 %v2018, %v2192
  %v2270 = vadd.f32 %v2019, %v2194
  %v2271 = vadd.f32 %v2020, %v2263
  %v2272 = vadd.f32 %v2021, %v2265
  %v2273 = vld [vmem:[%s3] sm:$0xff]
  %2275 = vset.pattern.permute.xlu0 0
  %2276 = vperm.xlu0 %2275, %v2273
  %v2277 = vpop.permute.xlu0 %2276
  %v2279 = vadd.f32 %v2267, %v2277
  %v2280 = vadd.f32 %v2268, %v2277
  %v2281 = vadd.f32 %v2269, %v2277
  %v2282 = vadd.f32 %v2270, %v2277
  %v2283 = vadd.f32 %v2271, %v2277
  %v2284 = vadd.f32 %v2272, %v2277
  %2285 = vst [vmem:[%s4] sm:$0xff] %v2279
  %2286 = vst [vmem:[%s4 + $0x8] sm:$0xff] %v2280
  %2287 = vst [vmem:[%s4 + $0x10] sm:$0xff] %v2281
  %2288 = vst [vmem:[%s4 + $0x18] sm:$0xff] %v2282
  %2289 = vst [vmem:[%s4 + $0x20] sm:$0xff] %v2283
  %2290 = vst [vmem:[%s4 + $0x28] sm:$0xff] %v2284
  // Predicated region
  $region18: #{reduction_forward.4} parent=0 // pred_check
    _
  $region19: #{reduction_forward.4} parent=0 // pred_check_branch
    %2292 = sbr.rel (0) target = $region21
  $region20: #{reduction_forward.4} parent=0 // pred_region
    _
  $region21: #{reduction_forward.4} parent=0 // pred_fallthru
    _
  // Predicated region
  $region22: #{reduction_forward.4} parent=0 // pred_check
    _
  $region23: #{reduction_forward.4} parent=0 // pred_check_branch
    %2294 = sbr.rel (0) target = $region25
  $region24: #{reduction_forward.4} parent=0 // pred_region
    _
  $region25: #{reduction_forward.4} parent=0 // pred_fallthru
    _

</llo_original>
